<compile_context>
chip_gen: v5e
topology: v5e:2x2
jax: 0.10.0
libtpu: 0.0.40
codegen_flags: <defaults>
</compile_context>

<pallas_src>
import jax
import jax.numpy as jnp
from jax import lax
from jax.experimental import pallas as pl
from jax.experimental.pallas import tpu as pltpu


def _speller_kernel(emb_ref, lis_ref, h0_ref, smask_ref,
                    w_ih_ref, b_ih_ref, w_hh_ref, b_hh_ref,
                    w_ac_ref, w_ad_ref, b_a_ref,
                    w_out_ref, b_out_ref,
                    logp_ref, dec_scr):
    # emb_ref:   (T, Bt, Hp)  time-major so xg[t] is a whole-tile slice
    # lis_ref:   (Bt, Sp, Hp)
    # h0_ref:    (Bt, Hp)
    # smask_ref: (1, Sp)      0 for real listener steps, -1e30 for padding
    # logp_ref:  (Bt, T, Vp)
    # dec_scr:   (Bt, T, Hp)  GRU outputs, batch-major for attention/output
    T, Bt, Hp = emb_ref.shape
    Vp = logp_ref.shape[2]

    # --- GRU input gates for all timesteps in one MXU matmul --------------
    emb = emb_ref[...].reshape(T * Bt, Hp)
    xg = (jnp.dot(emb, w_ih_ref[...], preferred_element_type=jnp.float32)
          + b_ih_ref[...]).reshape(T, Bt, 3 * Hp)

    w_hh = w_hh_ref[...]                          # (Hp, 3Hp), pre-transposed
    b_hh = b_hh_ref[...]                          # (1, 3Hp)

    # --- recurrence: hidden state carried in vregs, statically unrolled ---
    h = h0_ref[...]                               # (Bt, Hp)
    for t in range(T):                            # T is small & static
        hg = jnp.dot(h, w_hh, preferred_element_type=jnp.float32) + b_hh
        xg_t = xg[t]                              # (Bt, 3Hp), lane-aligned
        r = jax.nn.sigmoid(xg_t[:, 0:Hp] + hg[:, 0:Hp])
        z = jax.nn.sigmoid(xg_t[:, Hp:2 * Hp] + hg[:, Hp:2 * Hp])
        n = jnp.tanh(xg_t[:, 2 * Hp:] + r * hg[:, 2 * Hp:])
        h = (1.0 - z) * n + z * h
        dec_scr[:, t, :] = h

    dec = dec_scr[...]                            # (Bt, T, Hp)
    lis = lis_ref[...]                            # (Bt, Sp, Hp)

    # --- attention: softmax(dec @ lis^T) @ lis -----------------------------
    scores = jnp.einsum("bth,bsh->bts", dec, lis,
                        preferred_element_type=jnp.float32)   # (Bt, T, Sp)
    scores = scores + smask_ref[...]              # mask padded listener steps
    scores = scores - jnp.max(scores, axis=-1, keepdims=True)
    p = jnp.exp(scores)
    attn = p / jnp.sum(p, axis=-1, keepdims=True)
    context = jnp.einsum("bts,bsh->bth", attn, lis,
                         preferred_element_type=jnp.float32)  # (Bt, T, Hp)

    dec2 = dec.reshape(Bt * T, Hp)
    ctx2 = context.reshape(Bt * T, Hp)
    attn_out = jnp.tanh(
        jnp.dot(ctx2, w_ac_ref[...], preferred_element_type=jnp.float32)
        + jnp.dot(dec2, w_ad_ref[...], preferred_element_type=jnp.float32)
        + b_a_ref[...])                           # (Bt*T, Hp)

    # --- output projection + log_softmax (lane-dense: Vp = k*128) ---------
    logits = (jnp.dot(attn_out, w_out_ref[...],
                      preferred_element_type=jnp.float32)
              + b_out_ref[...])                   # (Bt*T, Vp)
    m = jnp.max(logits, axis=-1, keepdims=True)
    lse = m + jnp.log(jnp.sum(jnp.exp(logits - m), axis=-1, keepdims=True))
    logp_ref[...] = (logits - lse).reshape(Bt, T, Vp)


def _round_up(x, m):
    return (x + m - 1) // m * m


def speller_forward(tokens, listener_outputs, h0, params, block_b=8):
    """Teacher-forcing forward pass.

    tokens:           (B, L) int32, L = max_len + 1
    listener_outputs: (B, S, H) f32
    h0:               (1, B, H) f32  (layer_size=1 GRU init state)
    returns (y_hats (B, T) int32, logp (B, T, V) f32), T = L - 1
    """
    B, L = tokens.shape
    T = L - 1
    S, H = listener_outputs.shape[1], listener_outputs.shape[2]
    V = params["w_out"].shape[0]

    NEG = -1e30
    Hp = _round_up(H, 128)
    Sp = _round_up(S, 128)
    Vp = _round_up(V, 128)
    Bt = block_b
    Bp = _round_up(B, Bt)

    f32 = lambda x: x.astype(jnp.float32)

    # ---- glue: embedding lookup (gather) stays in plain JAX --------------
    emb_tab = jnp.pad(f32(params["embedding"]), ((0, 0), (0, Hp - H)))
    embedded = emb_tab[tokens[:, :-1]]                       # (B, T, Hp)
    embedded = jnp.pad(jnp.swapaxes(embedded, 0, 1),         # time-major
                       ((0, 0), (0, Bp - B), (0, 0)))        # (T, Bp, Hp)

    lis = jnp.pad(f32(listener_outputs),
                  ((0, Bp - B), (0, Sp - S), (0, Hp - H)))   # (Bp, Sp, Hp)
    h0_b = jnp.pad(f32(h0[0]), ((0, Bp - B), (0, Hp - H)))   # (Bp, Hp)

    # ---- pre-transposed, per-gate zero-padded weights ---------------------
    def gru_w(w):   # (3H, H) -> (Hp, 3Hp): transpose + pad each gate block
        return jnp.concatenate(
            [jnp.pad(f32(w[g * H:(g + 1) * H]).T,
                     ((0, Hp - H), (0, Hp - H))) for g in range(3)], axis=1)

    def gru_b(b):   # (3H,) -> (1, 3Hp): pad each gate block
        return jnp.concatenate(
            [jnp.pad(f32(b[g * H:(g + 1) * H]), (0, Hp - H))
             for g in range(3)]).reshape(1, 3 * Hp)

    w_ih_t = gru_w(params["w_ih"])
    w_hh_t = gru_w(params["w_hh"])
    b_ih = gru_b(params["b_ih"])
    b_hh = gru_b(params["b_hh"])

    # attention Linear acts on concat(context, dec): split, transpose, pad
    w_ac_t = jnp.pad(f32(params["w_attn"][:, :H]).T, ((0, Hp - H), (0, Hp - H)))
    w_ad_t = jnp.pad(f32(params["w_attn"][:, H:]).T, ((0, Hp - H), (0, Hp - H)))
    b_a = jnp.pad(f32(params["b_attn"]), (0, Hp - H)).reshape(1, Hp)

    w_out_t = jnp.pad(f32(params["w_out"]).T, ((0, Hp - H), (0, Vp - V)))
    b_out = jnp.pad(f32(params["b_out"]), (0, Vp - V),
                    constant_values=NEG).reshape(1, Vp)

    smask = jnp.where(jnp.arange(Sp) < S, 0.0, NEG).astype(
        jnp.float32).reshape(1, Sp)

    rep = lambda g: (0, 0)                                   # replicated 2-D

    grid_spec = pltpu.PrefetchScalarGridSpec(
        num_scalar_prefetch=0,
        grid=(Bp // Bt,),
        in_specs=[
            pl.BlockSpec((T, Bt, Hp), lambda g: (0, g, 0)),   # embedded
            pl.BlockSpec((Bt, Sp, Hp), lambda g: (g, 0, 0)),  # listener
            pl.BlockSpec((Bt, Hp), lambda g: (g, 0)),         # h0
            pl.BlockSpec((1, Sp), rep),                       # score mask
            pl.BlockSpec((Hp, 3 * Hp), rep),                  # W_ih^T
            pl.BlockSpec((1, 3 * Hp), rep),                   # b_ih
            pl.BlockSpec((Hp, 3 * Hp), rep),                  # W_hh^T
            pl.BlockSpec((1, 3 * Hp), rep),                   # b_hh
            pl.BlockSpec((Hp, Hp), rep),                      # W_attn ctx^T
            pl.BlockSpec((Hp, Hp), rep),                      # W_attn dec^T
            pl.BlockSpec((1, Hp), rep),                       # b_attn
            pl.BlockSpec((Hp, Vp), rep),                      # W_out^T
            pl.BlockSpec((1, Vp), rep),                       # b_out
        ],
        out_specs=pl.BlockSpec((Bt, T, Vp), lambda g: (g, 0, 0)),
        scratch_shapes=[pltpu.VMEM((Bt, T, Hp), jnp.float32)],
    )

    logp_pad = pl.pallas_call(
        _speller_kernel,
        out_shape=jax.ShapeDtypeStruct((Bp, T, Vp), jnp.float32),
        grid_spec=grid_spec,
        compiler_params=pltpu.CompilerParams(
            dimension_semantics=("parallel",)),
    )(embedded, lis, h0_b, smask,
      w_ih_t, b_ih, w_hh_t, b_hh,
      w_ac_t, w_ad_t, b_a, w_out_t, b_out)

    logp = logp_pad[:B, :, :V]
    y_hats = jnp.argmax(logp, axis=-1)
    return y_hats, logp


# ---------------- pure-JAX reference (for verification) ----------------
def speller_reference(tokens, listener_outputs, h0, params):
    H = listener_outputs.shape[2]
    emb = params["embedding"][tokens[:, :-1]]                 # (B, T, H)

    def gru_cell(h, x):
        xg = x @ params["w_ih"].T + params["b_ih"]
        hg = h @ params["w_hh"].T + params["b_hh"]
        r = jax.nn.sigmoid(xg[:, :H] + hg[:, :H])
        z = jax.nn.sigmoid(xg[:, H:2 * H] + hg[:, H:2 * H])
        n = jnp.tanh(xg[:, 2 * H:] + r * hg[:, 2 * H:])
        h_new = (1.0 - z) * n + z * h
        return h_new, h_new

    _, dec = lax.scan(gru_cell, h0[0], jnp.swapaxes(emb, 0, 1))
    dec = jnp.swapaxes(dec, 0, 1)                             # (B, T, H)

    scores = jnp.einsum("bth,bsh->bts", dec, listener_outputs)
    attn = jax.nn.softmax(scores, axis=-1)
    ctx = jnp.einsum("bts,bsh->bth", attn, listener_outputs)
    comb = jnp.concatenate([ctx, dec], axis=-1)
    out = jnp.tanh(comb @ params["w_attn"].T + params["b_attn"])
    logits = out @ params["w_out"].T + params["b_out"]
    logp = jax.nn.log_softmax(logits, axis=-1)
    return jnp.argmax(logp, axis=-1), logp


if __name__ == "__main__":
    B, L, S, H, V = 2, 9, 16, 32, 40          # L = max_len + 1, T = 8
    key = jax.random.PRNGKey(0)
    keys = jax.random.split(key, 12)
    u = lambda k, shape: jax.random.uniform(k, shape, jnp.float32, -0.1, 0.1)

    params = {
        "embedding": u(keys[0], (V, H)),
        "w_ih": u(keys[1], (3 * H, H)),
        "w_hh": u(keys[2], (3 * H, H)),
        "b_ih": u(keys[3], (3 * H,)),
        "b_hh": u(keys[4], (3 * H,)),
        "w_attn": u(keys[5], (H, 2 * H)),
        "b_attn": u(keys[6], (H,)),
        "w_out": u(keys[7], (V, H)),
        "b_out": u(keys[8], (V,)),
    }
    tokens = jax.random.randint(keys[9], (B, L), 0, V, jnp.int32)
    listener_outputs = u(keys[10], (B, S, H)) * 10.0
    h0 = u(keys[11], (1, B, H))               # layer_size=1 random init state

    y_hats, logp = jax.jit(speller_forward)(tokens, listener_outputs, h0, params)
    jax.block_until_ready((y_hats, logp))

    y_ref, logp_ref = speller_reference(tokens, listener_outputs, h0, params)
    assert logp.shape == (B, L - 1, V) and y_hats.shape == (B, L - 1)
    assert jnp.allclose(logp, logp_ref, atol=2e-3, rtol=2e-3)
    assert jnp.array_equal(y_hats, y_ref)

    print("KERNEL_OK")
</pallas_src>

<mosaic_0001>
module attributes {stable_mosaic.version = 11 : i64} {
  func.func @_speller_kernel(%arg0: i32, %arg1: memref<8x8x128xf32, #tpu.memory_space<vmem>>, %arg2: memref<8x128x128xf32, #tpu.memory_space<vmem>>, %arg3: memref<8x128xf32, #tpu.memory_space<vmem>>, %arg4: memref<1x128xf32, #tpu.memory_space<vmem>>, %arg5: memref<128x384xf32, #tpu.memory_space<vmem>>, %arg6: memref<1x384xf32, #tpu.memory_space<vmem>>, %arg7: memref<128x384xf32, #tpu.memory_space<vmem>>, %arg8: memref<1x384xf32, #tpu.memory_space<vmem>>, %arg9: memref<128x128xf32, #tpu.memory_space<vmem>>, %arg10: memref<128x128xf32, #tpu.memory_space<vmem>>, %arg11: memref<1x128xf32, #tpu.memory_space<vmem>>, %arg12: memref<128x128xf32, #tpu.memory_space<vmem>>, %arg13: memref<1x128xf32, #tpu.memory_space<vmem>>, %arg14: memref<8x8x128xf32, #tpu.memory_space<vmem>>, %arg15: memref<8x8x128xf32, #tpu.memory_space<vmem>>) attributes {dimension_semantics = [#tpu.dimension_semantics<parallel>], iteration_bounds = array<i64: 1>, scalar_prefetch = 0 : i64, scratch_operands = 1 : i64, tpu.core_type = #tpu.core_type<tc>, window_params = [{transform_indices = @transform_0, window_bounds = array<i64: 8, 8, 128>}, {transform_indices = @transform_1, window_bounds = array<i64: 8, 128, 128>}, {transform_indices = @transform_2, window_bounds = array<i64: 8, 128>}, {pipeline_mode = #tpu.pipeline_mode<synchronous>, transform_indices = @transform_3, window_bounds = array<i64: 1, 128>}, {pipeline_mode = #tpu.pipeline_mode<synchronous>, transform_indices = @transform_4, window_bounds = array<i64: 128, 384>}, {pipeline_mode = #tpu.pipeline_mode<synchronous>, transform_indices = @transform_5, window_bounds = array<i64: 1, 384>}, {pipeline_mode = #tpu.pipeline_mode<synchronous>, transform_indices = @transform_6, window_bounds = array<i64: 128, 384>}, {pipeline_mode = #tpu.pipeline_mode<synchronous>, transform_indices = @transform_7, window_bounds = array<i64: 1, 384>}, {pipeline_mode = #tpu.pipeline_mode<synchronous>, transform_indices = @transform_8, window_bounds = array<i64: 128, 128>}, {pipeline_mode = #tpu.pipeline_mode<synchronous>, transform_indices = @transform_9, window_bounds = array<i64: 128, 128>}, {pipeline_mode = #tpu.pipeline_mode<synchronous>, transform_indices = @transform_10, window_bounds = array<i64: 1, 128>}, {pipeline_mode = #tpu.pipeline_mode<synchronous>, transform_indices = @transform_11, window_bounds = array<i64: 128, 128>}, {pipeline_mode = #tpu.pipeline_mode<synchronous>, transform_indices = @transform_12, window_bounds = array<i64: 1, 128>}, {transform_indices = @transform_13, window_bounds = array<i64: 8, 8, 128>}]} {
    %c0 = arith.constant 0 : index
    %c0_0 = arith.constant 0 : index
    %c0_1 = arith.constant 0 : index
    %0 = vector.load %arg1[%c0, %c0_0, %c0_1] : memref<8x8x128xf32, #tpu.memory_space<vmem>>, vector<8x8x128xf32>
    %1 = vector.shape_cast %0 : vector<8x8x128xf32> to vector<64x128xf32>
    %c0_2 = arith.constant 0 : index
    %c0_3 = arith.constant 0 : index
    %2 = vector.load %arg5[%c0_2, %c0_3] : memref<128x384xf32, #tpu.memory_space<vmem>>, vector<128x384xf32>
    %cst = arith.constant dense<0.000000e+00> : vector<64x384xf32>
    %3 = tpu.matmul %1, %2, %cst {dimension_numbers = #tpu.dot_dimension_numbers<[1], [0], [0], [1], [0, 0, 1, 1], [], []>} : vector<64x128xf32>, vector<128x384xf32>, vector<64x384xf32> -> vector<64x384xf32>
    %c0_4 = arith.constant 0 : index
    %c0_5 = arith.constant 0 : index
    %4 = vector.load %arg6[%c0_4, %c0_5] : memref<1x384xf32, #tpu.memory_space<vmem>>, vector<1x384xf32>
    %5 = vector.broadcast %4 : vector<1x384xf32> to vector<64x384xf32>
    %6 = arith.addf %3, %5 : vector<64x384xf32>
    %7 = vector.shape_cast %6 : vector<64x384xf32> to vector<8x8x384xf32>
    %c0_6 = arith.constant 0 : index
    %c0_7 = arith.constant 0 : index
    %8 = vector.load %arg7[%c0_6, %c0_7] : memref<128x384xf32, #tpu.memory_space<vmem>>, vector<128x384xf32>
    %c0_8 = arith.constant 0 : index
    %c0_9 = arith.constant 0 : index
    %9 = vector.load %arg8[%c0_8, %c0_9] : memref<1x384xf32, #tpu.memory_space<vmem>>, vector<1x384xf32>
    %c0_10 = arith.constant 0 : index
    %c0_11 = arith.constant 0 : index
    %10 = vector.load %arg3[%c0_10, %c0_11] : memref<8x128xf32, #tpu.memory_space<vmem>>, vector<8x128xf32>
    %cst_12 = arith.constant dense<0.000000e+00> : vector<8x384xf32>
    %11 = tpu.matmul %10, %8, %cst_12 {dimension_numbers = #tpu.dot_dimension_numbers<[1], [0], [0], [1], [0, 0, 1, 1], [], []>} : vector<8x128xf32>, vector<128x384xf32>, vector<8x384xf32> -> vector<8x384xf32>
    %12 = vector.broadcast %9 : vector<1x384xf32> to vector<8x384xf32>
    %13 = arith.addf %11, %12 : vector<8x384xf32>
    %14 = vector.extract_strided_slice %7 {offsets = [0, 0, 0], sizes = [1, 8, 384], strides = [1, 1, 1]} : vector<8x8x384xf32> to vector<1x8x384xf32>
    %15 = vector.shape_cast %14 : vector<1x8x384xf32> to vector<8x384xf32>
    %16 = vector.extract_strided_slice %15 {offsets = [0, 0], sizes = [8, 128], strides = [1, 1]} : vector<8x384xf32> to vector<8x128xf32>
    %17 = vector.extract_strided_slice %13 {offsets = [0, 0], sizes = [8, 128], strides = [1, 1]} : vector<8x384xf32> to vector<8x128xf32>
    %18 = arith.addf %16, %17 : vector<8x128xf32>
    %19 = arith.negf %18 : vector<8x128xf32>
    %20 = math.exp %19 : vector<8x128xf32>
    %cst_13 = arith.constant 1.000000e+00 : f32
    %21 = vector.broadcast %cst_13 : f32 to vector<8x128xf32>
    %22 = arith.addf %21, %20 : vector<8x128xf32>
    %23 = arith.divf %21, %22 : vector<8x128xf32>
    %24 = vector.extract_strided_slice %15 {offsets = [0, 128], sizes = [8, 128], strides = [1, 1]} : vector<8x384xf32> to vector<8x128xf32>
    %25 = vector.extract_strided_slice %13 {offsets = [0, 128], sizes = [8, 128], strides = [1, 1]} : vector<8x384xf32> to vector<8x128xf32>
    %26 = arith.addf %24, %25 : vector<8x128xf32>
    %27 = arith.negf %26 : vector<8x128xf32>
    %28 = math.exp %27 : vector<8x128xf32>
    %cst_14 = arith.constant 1.000000e+00 : f32
    %29 = vector.broadcast %cst_14 : f32 to vector<8x128xf32>
    %30 = arith.addf %29, %28 : vector<8x128xf32>
    %31 = arith.divf %29, %30 : vector<8x128xf32>
    %32 = vector.extract_strided_slice %15 {offsets = [0, 256], sizes = [8, 128], strides = [1, 1]} : vector<8x384xf32> to vector<8x128xf32>
    %33 = vector.extract_strided_slice %13 {offsets = [0, 256], sizes = [8, 128], strides = [1, 1]} : vector<8x384xf32> to vector<8x128xf32>
    %34 = arith.mulf %23, %33 : vector<8x128xf32>
    %35 = arith.addf %32, %34 : vector<8x128xf32>
    %36 = math.tanh %35 : vector<8x128xf32>
    %cst_15 = arith.constant 1.000000e+00 : f32
    %37 = vector.broadcast %cst_15 : f32 to vector<8x128xf32>
    %38 = arith.subf %37, %31 : vector<8x128xf32>
    %39 = arith.mulf %38, %36 : vector<8x128xf32>
    %40 = arith.mulf %31, %10 : vector<8x128xf32>
    %41 = arith.addf %39, %40 : vector<8x128xf32>
    %c0_16 = arith.constant 0 : index
    %c0_17 = arith.constant 0 : index
    %c0_18 = arith.constant 0 : index
    %42 = vector.load %arg15[%c0_16, %c0_17, %c0_18] : memref<8x8x128xf32, #tpu.memory_space<vmem>>, vector<8x1x128xf32>
    %43 = vector.shape_cast %42 : vector<8x1x128xf32> to vector<8x128xf32>
    %44 = vector.shape_cast %41 : vector<8x128xf32> to vector<8x1x128xf32>
    tpu.vector_store %arg15[%c0_16, %c0_17, %c0_18], %44 {strides = array<i32>} : memref<8x8x128xf32, #tpu.memory_space<vmem>>, vector<8x1x128xf32>,
    %cst_19 = arith.constant dense<0.000000e+00> : vector<8x384xf32>
    %45 = tpu.matmul %41, %8, %cst_19 {dimension_numbers = #tpu.dot_dimension_numbers<[1], [0], [0], [1], [0, 0, 1, 1], [], []>} : vector<8x128xf32>, vector<128x384xf32>, vector<8x384xf32> -> vector<8x384xf32>
    %46 = vector.broadcast %9 : vector<1x384xf32> to vector<8x384xf32>
    %47 = arith.addf %45, %46 : vector<8x384xf32>
    %48 = vector.extract_strided_slice %7 {offsets = [1, 0, 0], sizes = [1, 8, 384], strides = [1, 1, 1]} : vector<8x8x384xf32> to vector<1x8x384xf32>
    %49 = vector.shape_cast %48 : vector<1x8x384xf32> to vector<8x384xf32>
    %50 = vector.extract_strided_slice %49 {offsets = [0, 0], sizes = [8, 128], strides = [1, 1]} : vector<8x384xf32> to vector<8x128xf32>
    %51 = vector.extract_strided_slice %47 {offsets = [0, 0], sizes = [8, 128], strides = [1, 1]} : vector<8x384xf32> to vector<8x128xf32>
    %52 = arith.addf %50, %51 : vector<8x128xf32>
    %53 = arith.negf %52 : vector<8x128xf32>
    %54 = math.exp %53 : vector<8x128xf32>
    %cst_20 = arith.constant 1.000000e+00 : f32
    %55 = vector.broadcast %cst_20 : f32 to vector<8x128xf32>
    %56 = arith.addf %55, %54 : vector<8x128xf32>
    %57 = arith.divf %55, %56 : vector<8x128xf32>
    %58 = vector.extract_strided_slice %49 {offsets = [0, 128], sizes = [8, 128], strides = [1, 1]} : vector<8x384xf32> to vector<8x128xf32>
    %59 = vector.extract_strided_slice %47 {offsets = [0, 128], sizes = [8, 128], strides = [1, 1]} : vector<8x384xf32> to vector<8x128xf32>
    %60 = arith.addf %58, %59 : vector<8x128xf32>
    %61 = arith.negf %60 : vector<8x128xf32>
    %62 = math.exp %61 : vector<8x128xf32>
    %cst_21 = arith.constant 1.000000e+00 : f32
    %63 = vector.broadcast %cst_21 : f32 to vector<8x128xf32>
    %64 = arith.addf %63, %62 : vector<8x128xf32>
    %65 = arith.divf %63, %64 : vector<8x128xf32>
    %66 = vector.extract_strided_slice %49 {offsets = [0, 256], sizes = [8, 128], strides = [1, 1]} : vector<8x384xf32> to vector<8x128xf32>
    %67 = vector.extract_strided_slice %47 {offsets = [0, 256], sizes = [8, 128], strides = [1, 1]} : vector<8x384xf32> to vector<8x128xf32>
    %68 = arith.mulf %57, %67 : vector<8x128xf32>
    %69 = arith.addf %66, %68 : vector<8x128xf32>
    %70 = math.tanh %69 : vector<8x128xf32>
    %cst_22 = arith.constant 1.000000e+00 : f32
    %71 = vector.broadcast %cst_22 : f32 to vector<8x128xf32>
    %72 = arith.subf %71, %65 : vector<8x128xf32>
    %73 = arith.mulf %72, %70 : vector<8x128xf32>
    %74 = arith.mulf %65, %41 : vector<8x128xf32>
    %75 = arith.addf %73, %74 : vector<8x128xf32>
    %c0_23 = arith.constant 0 : index
    %c1 = arith.constant 1 : index
    %c0_24 = arith.constant 0 : index
    %76 = vector.load %arg15[%c0_23, %c1, %c0_24] : memref<8x8x128xf32, #tpu.memory_space<vmem>>, vector<8x1x128xf32>
    %77 = vector.shape_cast %76 : vector<8x1x128xf32> to vector<8x128xf32>
    %78 = vector.shape_cast %75 : vector<8x128xf32> to vector<8x1x128xf32>
    tpu.vector_store %arg15[%c0_23, %c1, %c0_24], %78 {strides = array<i32>} : memref<8x8x128xf32, #tpu.memory_space<vmem>>, vector<8x1x128xf32>,
    %cst_25 = arith.constant dense<0.000000e+00> : vector<8x384xf32>
    %79 = tpu.matmul %75, %8, %cst_25 {dimension_numbers = #tpu.dot_dimension_numbers<[1], [0], [0], [1], [0, 0, 1, 1], [], []>} : vector<8x128xf32>, vector<128x384xf32>, vector<8x384xf32> -> vector<8x384xf32>
    %80 = vector.broadcast %9 : vector<1x384xf32> to vector<8x384xf32>
    %81 = arith.addf %79, %80 : vector<8x384xf32>
    %82 = vector.extract_strided_slice %7 {offsets = [2, 0, 0], sizes = [1, 8, 384], strides = [1, 1, 1]} : vector<8x8x384xf32> to vector<1x8x384xf32>
    %83 = vector.shape_cast %82 : vector<1x8x384xf32> to vector<8x384xf32>
    %84 = vector.extract_strided_slice %83 {offsets = [0, 0], sizes = [8, 128], strides = [1, 1]} : vector<8x384xf32> to vector<8x128xf32>
    %85 = vector.extract_strided_slice %81 {offsets = [0, 0], sizes = [8, 128], strides = [1, 1]} : vector<8x384xf32> to vector<8x128xf32>
    %86 = arith.addf %84, %85 : vector<8x128xf32>
    %87 = arith.negf %86 : vector<8x128xf32>
    %88 = math.exp %87 : vector<8x128xf32>
    %cst_26 = arith.constant 1.000000e+00 : f32
    %89 = vector.broadcast %cst_26 : f32 to vector<8x128xf32>
    %90 = arith.addf %89, %88 : vector<8x128xf32>
    %91 = arith.divf %89, %90 : vector<8x128xf32>
    %92 = vector.extract_strided_slice %83 {offsets = [0, 128], sizes = [8, 128], strides = [1, 1]} : vector<8x384xf32> to vector<8x128xf32>
    %93 = vector.extract_strided_slice %81 {offsets = [0, 128], sizes = [8, 128], strides = [1, 1]} : vector<8x384xf32> to vector<8x128xf32>
    %94 = arith.addf %92, %93 : vector<8x128xf32>
    %95 = arith.negf %94 : vector<8x128xf32>
    %96 = math.exp %95 : vector<8x128xf32>
    %cst_27 = arith.constant 1.000000e+00 : f32
    %97 = vector.broadcast %cst_27 : f32 to vector<8x128xf32>
    %98 = arith.addf %97, %96 : vector<8x128xf32>
    %99 = arith.divf %97, %98 : vector<8x128xf32>
    %100 = vector.extract_strided_slice %83 {offsets = [0, 256], sizes = [8, 128], strides = [1, 1]} : vector<8x384xf32> to vector<8x128xf32>
    %101 = vector.extract_strided_slice %81 {offsets = [0, 256], sizes = [8, 128], strides = [1, 1]} : vector<8x384xf32> to vector<8x128xf32>
    %102 = arith.mulf %91, %101 : vector<8x128xf32>
    %103 = arith.addf %100, %102 : vector<8x128xf32>
    %104 = math.tanh %103 : vector<8x128xf32>
    %cst_28 = arith.constant 1.000000e+00 : f32
    %105 = vector.broadcast %cst_28 : f32 to vector<8x128xf32>
    %106 = arith.subf %105, %99 : vector<8x128xf32>
    %107 = arith.mulf %106, %104 : vector<8x128xf32>
    %108 = arith.mulf %99, %75 : vector<8x128xf32>
    %109 = arith.addf %107, %108 : vector<8x128xf32>
    %c0_29 = arith.constant 0 : index
    %c2 = arith.constant 2 : index
    %c0_30 = arith.constant 0 : index
    %110 = vector.load %arg15[%c0_29, %c2, %c0_30] : memref<8x8x128xf32, #tpu.memory_space<vmem>>, vector<8x1x128xf32>
    %111 = vector.shape_cast %110 : vector<8x1x128xf32> to vector<8x128xf32>
    %112 = vector.shape_cast %109 : vector<8x128xf32> to vector<8x1x128xf32>
    tpu.vector_store %arg15[%c0_29, %c2, %c0_30], %112 {strides = array<i32>} : memref<8x8x128xf32, #tpu.memory_space<vmem>>, vector<8x1x128xf32>,
    %cst_31 = arith.constant dense<0.000000e+00> : vector<8x384xf32>
    %113 = tpu.matmul %109, %8, %cst_31 {dimension_numbers = #tpu.dot_dimension_numbers<[1], [0], [0], [1], [0, 0, 1, 1], [], []>} : vector<8x128xf32>, vector<128x384xf32>, vector<8x384xf32> -> vector<8x384xf32>
    %114 = vector.broadcast %9 : vector<1x384xf32> to vector<8x384xf32>
    %115 = arith.addf %113, %114 : vector<8x384xf32>
    %116 = vector.extract_strided_slice %7 {offsets = [3, 0, 0], sizes = [1, 8, 384], strides = [1, 1, 1]} : vector<8x8x384xf32> to vector<1x8x384xf32>
    %117 = vector.shape_cast %116 : vector<1x8x384xf32> to vector<8x384xf32>
    %118 = vector.extract_strided_slice %117 {offsets = [0, 0], sizes = [8, 128], strides = [1, 1]} : vector<8x384xf32> to vector<8x128xf32>
    %119 = vector.extract_strided_slice %115 {offsets = [0, 0], sizes = [8, 128], strides = [1, 1]} : vector<8x384xf32> to vector<8x128xf32>
    %120 = arith.addf %118, %119 : vector<8x128xf32>
    %121 = arith.negf %120 : vector<8x128xf32>
    %122 = math.exp %121 : vector<8x128xf32>
    %cst_32 = arith.constant 1.000000e+00 : f32
    %123 = vector.broadcast %cst_32 : f32 to vector<8x128xf32>
    %124 = arith.addf %123, %122 : vector<8x128xf32>
    %125 = arith.divf %123, %124 : vector<8x128xf32>
    %126 = vector.extract_strided_slice %117 {offsets = [0, 128], sizes = [8, 128], strides = [1, 1]} : vector<8x384xf32> to vector<8x128xf32>
    %127 = vector.extract_strided_slice %115 {offsets = [0, 128], sizes = [8, 128], strides = [1, 1]} : vector<8x384xf32> to vector<8x128xf32>
    %128 = arith.addf %126, %127 : vector<8x128xf32>
    %129 = arith.negf %128 : vector<8x128xf32>
    %130 = math.exp %129 : vector<8x128xf32>
    %cst_33 = arith.constant 1.000000e+00 : f32
    %131 = vector.broadcast %cst_33 : f32 to vector<8x128xf32>
    %132 = arith.addf %131, %130 : vector<8x128xf32>
    %133 = arith.divf %131, %132 : vector<8x128xf32>
    %134 = vector.extract_strided_slice %117 {offsets = [0, 256], sizes = [8, 128], strides = [1, 1]} : vector<8x384xf32> to vector<8x128xf32>
    %135 = vector.extract_strided_slice %115 {offsets = [0, 256], sizes = [8, 128], strides = [1, 1]} : vector<8x384xf32> to vector<8x128xf32>
    %136 = arith.mulf %125, %135 : vector<8x128xf32>
    %137 = arith.addf %134, %136 : vector<8x128xf32>
    %138 = math.tanh %137 : vector<8x128xf32>
    %cst_34 = arith.constant 1.000000e+00 : f32
    %139 = vector.broadcast %cst_34 : f32 to vector<8x128xf32>
    %140 = arith.subf %139, %133 : vector<8x128xf32>
    %141 = arith.mulf %140, %138 : vector<8x128xf32>
    %142 = arith.mulf %133, %109 : vector<8x128xf32>
    %143 = arith.addf %141, %142 : vector<8x128xf32>
    %c0_35 = arith.constant 0 : index
    %c3 = arith.constant 3 : index
    %c0_36 = arith.constant 0 : index
    %144 = vector.load %arg15[%c0_35, %c3, %c0_36] : memref<8x8x128xf32, #tpu.memory_space<vmem>>, vector<8x1x128xf32>
    %145 = vector.shape_cast %144 : vector<8x1x128xf32> to vector<8x128xf32>
    %146 = vector.shape_cast %143 : vector<8x128xf32> to vector<8x1x128xf32>
    tpu.vector_store %arg15[%c0_35, %c3, %c0_36], %146 {strides = array<i32>} : memref<8x8x128xf32, #tpu.memory_space<vmem>>, vector<8x1x128xf32>,
    %cst_37 = arith.constant dense<0.000000e+00> : vector<8x384xf32>
    %147 = tpu.matmul %143, %8, %cst_37 {dimension_numbers = #tpu.dot_dimension_numbers<[1], [0], [0], [1], [0, 0, 1, 1], [], []>} : vector<8x128xf32>, vector<128x384xf32>, vector<8x384xf32> -> vector<8x384xf32>
    %148 = vector.broadcast %9 : vector<1x384xf32> to vector<8x384xf32>
    %149 = arith.addf %147, %148 : vector<8x384xf32>
    %150 = vector.extract_strided_slice %7 {offsets = [4, 0, 0], sizes = [1, 8, 384], strides = [1, 1, 1]} : vector<8x8x384xf32> to vector<1x8x384xf32>
    %151 = vector.shape_cast %150 : vector<1x8x384xf32> to vector<8x384xf32>
    %152 = vector.extract_strided_slice %151 {offsets = [0, 0], sizes = [8, 128], strides = [1, 1]} : vector<8x384xf32> to vector<8x128xf32>
    %153 = vector.extract_strided_slice %149 {offsets = [0, 0], sizes = [8, 128], strides = [1, 1]} : vector<8x384xf32> to vector<8x128xf32>
    %154 = arith.addf %152, %153 : vector<8x128xf32>
    %155 = arith.negf %154 : vector<8x128xf32>
    %156 = math.exp %155 : vector<8x128xf32>
    %cst_38 = arith.constant 1.000000e+00 : f32
    %157 = vector.broadcast %cst_38 : f32 to vector<8x128xf32>
    %158 = arith.addf %157, %156 : vector<8x128xf32>
    %159 = arith.divf %157, %158 : vector<8x128xf32>
    %160 = vector.extract_strided_slice %151 {offsets = [0, 128], sizes = [8, 128], strides = [1, 1]} : vector<8x384xf32> to vector<8x128xf32>
    %161 = vector.extract_strided_slice %149 {offsets = [0, 128], sizes = [8, 128], strides = [1, 1]} : vector<8x384xf32> to vector<8x128xf32>
    %162 = arith.addf %160, %161 : vector<8x128xf32>
    %163 = arith.negf %162 : vector<8x128xf32>
    %164 = math.exp %163 : vector<8x128xf32>
    %cst_39 = arith.constant 1.000000e+00 : f32
    %165 = vector.broadcast %cst_39 : f32 to vector<8x128xf32>
    %166 = arith.addf %165, %164 : vector<8x128xf32>
    %167 = arith.divf %165, %166 : vector<8x128xf32>
    %168 = vector.extract_strided_slice %151 {offsets = [0, 256], sizes = [8, 128], strides = [1, 1]} : vector<8x384xf32> to vector<8x128xf32>
    %169 = vector.extract_strided_slice %149 {offsets = [0, 256], sizes = [8, 128], strides = [1, 1]} : vector<8x384xf32> to vector<8x128xf32>
    %170 = arith.mulf %159, %169 : vector<8x128xf32>
    %171 = arith.addf %168, %170 : vector<8x128xf32>
    %172 = math.tanh %171 : vector<8x128xf32>
    %cst_40 = arith.constant 1.000000e+00 : f32
    %173 = vector.broadcast %cst_40 : f32 to vector<8x128xf32>
    %174 = arith.subf %173, %167 : vector<8x128xf32>
    %175 = arith.mulf %174, %172 : vector<8x128xf32>
    %176 = arith.mulf %167, %143 : vector<8x128xf32>
    %177 = arith.addf %175, %176 : vector<8x128xf32>
    %c0_41 = arith.constant 0 : index
    %c4 = arith.constant 4 : index
    %c0_42 = arith.constant 0 : index
    %178 = vector.load %arg15[%c0_41, %c4, %c0_42] : memref<8x8x128xf32, #tpu.memory_space<vmem>>, vector<8x1x128xf32>
    %179 = vector.shape_cast %178 : vector<8x1x128xf32> to vector<8x128xf32>
    %180 = vector.shape_cast %177 : vector<8x128xf32> to vector<8x1x128xf32>
    tpu.vector_store %arg15[%c0_41, %c4, %c0_42], %180 {strides = array<i32>} : memref<8x8x128xf32, #tpu.memory_space<vmem>>, vector<8x1x128xf32>,
    %cst_43 = arith.constant dense<0.000000e+00> : vector<8x384xf32>
    %181 = tpu.matmul %177, %8, %cst_43 {dimension_numbers = #tpu.dot_dimension_numbers<[1], [0], [0], [1], [0, 0, 1, 1], [], []>} : vector<8x128xf32>, vector<128x384xf32>, vector<8x384xf32> -> vector<8x384xf32>
    %182 = vector.broadcast %9 : vector<1x384xf32> to vector<8x384xf32>
    %183 = arith.addf %181, %182 : vector<8x384xf32>
    %184 = vector.extract_strided_slice %7 {offsets = [5, 0, 0], sizes = [1, 8, 384], strides = [1, 1, 1]} : vector<8x8x384xf32> to vector<1x8x384xf32>
    %185 = vector.shape_cast %184 : vector<1x8x384xf32> to vector<8x384xf32>
    %186 = vector.extract_strided_slice %185 {offsets = [0, 0], sizes = [8, 128], strides = [1, 1]} : vector<8x384xf32> to vector<8x128xf32>
    %187 = vector.extract_strided_slice %183 {offsets = [0, 0], sizes = [8, 128], strides = [1, 1]} : vector<8x384xf32> to vector<8x128xf32>
    %188 = arith.addf %186, %187 : vector<8x128xf32>
    %189 = arith.negf %188 : vector<8x128xf32>
    %190 = math.exp %189 : vector<8x128xf32>
    %cst_44 = arith.constant 1.000000e+00 : f32
    %191 = vector.broadcast %cst_44 : f32 to vector<8x128xf32>
    %192 = arith.addf %191, %190 : vector<8x128xf32>
    %193 = arith.divf %191, %192 : vector<8x128xf32>
    %194 = vector.extract_strided_slice %185 {offsets = [0, 128], sizes = [8, 128], strides = [1, 1]} : vector<8x384xf32> to vector<8x128xf32>
    %195 = vector.extract_strided_slice %183 {offsets = [0, 128], sizes = [8, 128], strides = [1, 1]} : vector<8x384xf32> to vector<8x128xf32>
    %196 = arith.addf %194, %195 : vector<8x128xf32>
    %197 = arith.negf %196 : vector<8x128xf32>
    %198 = math.exp %197 : vector<8x128xf32>
    %cst_45 = arith.constant 1.000000e+00 : f32
    %199 = vector.broadcast %cst_45 : f32 to vector<8x128xf32>
    %200 = arith.addf %199, %198 : vector<8x128xf32>
    %201 = arith.divf %199, %200 : vector<8x128xf32>
    %202 = vector.extract_strided_slice %185 {offsets = [0, 256], sizes = [8, 128], strides = [1, 1]} : vector<8x384xf32> to vector<8x128xf32>
    %203 = vector.extract_strided_slice %183 {offsets = [0, 256], sizes = [8, 128], strides = [1, 1]} : vector<8x384xf32> to vector<8x128xf32>
    %204 = arith.mulf %193, %203 : vector<8x128xf32>
    %205 = arith.addf %202, %204 : vector<8x128xf32>
    %206 = math.tanh %205 : vector<8x128xf32>
    %cst_46 = arith.constant 1.000000e+00 : f32
    %207 = vector.broadcast %cst_46 : f32 to vector<8x128xf32>
    %208 = arith.subf %207, %201 : vector<8x128xf32>
    %209 = arith.mulf %208, %206 : vector<8x128xf32>
    %210 = arith.mulf %201, %177 : vector<8x128xf32>
    %211 = arith.addf %209, %210 : vector<8x128xf32>
    %c0_47 = arith.constant 0 : index
    %c5 = arith.constant 5 : index
    %c0_48 = arith.constant 0 : index
    %212 = vector.load %arg15[%c0_47, %c5, %c0_48] : memref<8x8x128xf32, #tpu.memory_space<vmem>>, vector<8x1x128xf32>
    %213 = vector.shape_cast %212 : vector<8x1x128xf32> to vector<8x128xf32>
    %214 = vector.shape_cast %211 : vector<8x128xf32> to vector<8x1x128xf32>
    tpu.vector_store %arg15[%c0_47, %c5, %c0_48], %214 {strides = array<i32>} : memref<8x8x128xf32, #tpu.memory_space<vmem>>, vector<8x1x128xf32>,
    %cst_49 = arith.constant dense<0.000000e+00> : vector<8x384xf32>
    %215 = tpu.matmul %211, %8, %cst_49 {dimension_numbers = #tpu.dot_dimension_numbers<[1], [0], [0], [1], [0, 0, 1, 1], [], []>} : vector<8x128xf32>, vector<128x384xf32>, vector<8x384xf32> -> vector<8x384xf32>
    %216 = vector.broadcast %9 : vector<1x384xf32> to vector<8x384xf32>
    %217 = arith.addf %215, %216 : vector<8x384xf32>
    %218 = vector.extract_strided_slice %7 {offsets = [6, 0, 0], sizes = [1, 8, 384], strides = [1, 1, 1]} : vector<8x8x384xf32> to vector<1x8x384xf32>
    %219 = vector.shape_cast %218 : vector<1x8x384xf32> to vector<8x384xf32>
    %220 = vector.extract_strided_slice %219 {offsets = [0, 0], sizes = [8, 128], strides = [1, 1]} : vector<8x384xf32> to vector<8x128xf32>
    %221 = vector.extract_strided_slice %217 {offsets = [0, 0], sizes = [8, 128], strides = [1, 1]} : vector<8x384xf32> to vector<8x128xf32>
    %222 = arith.addf %220, %221 : vector<8x128xf32>
    %223 = arith.negf %222 : vector<8x128xf32>
    %224 = math.exp %223 : vector<8x128xf32>
    %cst_50 = arith.constant 1.000000e+00 : f32
    %225 = vector.broadcast %cst_50 : f32 to vector<8x128xf32>
    %226 = arith.addf %225, %224 : vector<8x128xf32>
    %227 = arith.divf %225, %226 : vector<8x128xf32>
    %228 = vector.extract_strided_slice %219 {offsets = [0, 128], sizes = [8, 128], strides = [1, 1]} : vector<8x384xf32> to vector<8x128xf32>
    %229 = vector.extract_strided_slice %217 {offsets = [0, 128], sizes = [8, 128], strides = [1, 1]} : vector<8x384xf32> to vector<8x128xf32>
    %230 = arith.addf %228, %229 : vector<8x128xf32>
    %231 = arith.negf %230 : vector<8x128xf32>
    %232 = math.exp %231 : vector<8x128xf32>
    %cst_51 = arith.constant 1.000000e+00 : f32
    %233 = vector.broadcast %cst_51 : f32 to vector<8x128xf32>
    %234 = arith.addf %233, %232 : vector<8x128xf32>
    %235 = arith.divf %233, %234 : vector<8x128xf32>
    %236 = vector.extract_strided_slice %219 {offsets = [0, 256], sizes = [8, 128], strides = [1, 1]} : vector<8x384xf32> to vector<8x128xf32>
    %237 = vector.extract_strided_slice %217 {offsets = [0, 256], sizes = [8, 128], strides = [1, 1]} : vector<8x384xf32> to vector<8x128xf32>
    %238 = arith.mulf %227, %237 : vector<8x128xf32>
    %239 = arith.addf %236, %238 : vector<8x128xf32>
    %240 = math.tanh %239 : vector<8x128xf32>
    %cst_52 = arith.constant 1.000000e+00 : f32
    %241 = vector.broadcast %cst_52 : f32 to vector<8x128xf32>
    %242 = arith.subf %241, %235 : vector<8x128xf32>
    %243 = arith.mulf %242, %240 : vector<8x128xf32>
    %244 = arith.mulf %235, %211 : vector<8x128xf32>
    %245 = arith.addf %243, %244 : vector<8x128xf32>
    %c0_53 = arith.constant 0 : index
    %c6 = arith.constant 6 : index
    %c0_54 = arith.constant 0 : index
    %246 = vector.load %arg15[%c0_53, %c6, %c0_54] : memref<8x8x128xf32, #tpu.memory_space<vmem>>, vector<8x1x128xf32>
    %247 = vector.shape_cast %246 : vector<8x1x128xf32> to vector<8x128xf32>
    %248 = vector.shape_cast %245 : vector<8x128xf32> to vector<8x1x128xf32>
    tpu.vector_store %arg15[%c0_53, %c6, %c0_54], %248 {strides = array<i32>} : memref<8x8x128xf32, #tpu.memory_space<vmem>>, vector<8x1x128xf32>,
    %cst_55 = arith.constant dense<0.000000e+00> : vector<8x384xf32>
    %249 = tpu.matmul %245, %8, %cst_55 {dimension_numbers = #tpu.dot_dimension_numbers<[1], [0], [0], [1], [0, 0, 1, 1], [], []>} : vector<8x128xf32>, vector<128x384xf32>, vector<8x384xf32> -> vector<8x384xf32>
    %250 = vector.broadcast %9 : vector<1x384xf32> to vector<8x384xf32>
    %251 = arith.addf %249, %250 : vector<8x384xf32>
    %252 = vector.extract_strided_slice %7 {offsets = [7, 0, 0], sizes = [1, 8, 384], strides = [1, 1, 1]} : vector<8x8x384xf32> to vector<1x8x384xf32>
    %253 = vector.shape_cast %252 : vector<1x8x384xf32> to vector<8x384xf32>
    %254 = vector.extract_strided_slice %253 {offsets = [0, 0], sizes = [8, 128], strides = [1, 1]} : vector<8x384xf32> to vector<8x128xf32>
    %255 = vector.extract_strided_slice %251 {offsets = [0, 0], sizes = [8, 128], strides = [1, 1]} : vector<8x384xf32> to vector<8x128xf32>
    %256 = arith.addf %254, %255 : vector<8x128xf32>
    %257 = arith.negf %256 : vector<8x128xf32>
    %258 = math.exp %257 : vector<8x128xf32>
    %cst_56 = arith.constant 1.000000e+00 : f32
    %259 = vector.broadcast %cst_56 : f32 to vector<8x128xf32>
    %260 = arith.addf %259, %258 : vector<8x128xf32>
    %261 = arith.divf %259, %260 : vector<8x128xf32>
    %262 = vector.extract_strided_slice %253 {offsets = [0, 128], sizes = [8, 128], strides = [1, 1]} : vector<8x384xf32> to vector<8x128xf32>
    %263 = vector.extract_strided_slice %251 {offsets = [0, 128], sizes = [8, 128], strides = [1, 1]} : vector<8x384xf32> to vector<8x128xf32>
    %264 = arith.addf %262, %263 : vector<8x128xf32>
    %265 = arith.negf %264 : vector<8x128xf32>
    %266 = math.exp %265 : vector<8x128xf32>
    %cst_57 = arith.constant 1.000000e+00 : f32
    %267 = vector.broadcast %cst_57 : f32 to vector<8x128xf32>
    %268 = arith.addf %267, %266 : vector<8x128xf32>
    %269 = arith.divf %267, %268 : vector<8x128xf32>
    %270 = vector.extract_strided_slice %253 {offsets = [0, 256], sizes = [8, 128], strides = [1, 1]} : vector<8x384xf32> to vector<8x128xf32>
    %271 = vector.extract_strided_slice %251 {offsets = [0, 256], sizes = [8, 128], strides = [1, 1]} : vector<8x384xf32> to vector<8x128xf32>
    %272 = arith.mulf %261, %271 : vector<8x128xf32>
    %273 = arith.addf %270, %272 : vector<8x128xf32>
    %274 = math.tanh %273 : vector<8x128xf32>
    %cst_58 = arith.constant 1.000000e+00 : f32
    %275 = vector.broadcast %cst_58 : f32 to vector<8x128xf32>
    %276 = arith.subf %275, %269 : vector<8x128xf32>
    %277 = arith.mulf %276, %274 : vector<8x128xf32>
    %278 = arith.mulf %269, %245 : vector<8x128xf32>
    %279 = arith.addf %277, %278 : vector<8x128xf32>
    %c0_59 = arith.constant 0 : index
    %c7 = arith.constant 7 : index
    %c0_60 = arith.constant 0 : index
    %280 = vector.load %arg15[%c0_59, %c7, %c0_60] : memref<8x8x128xf32, #tpu.memory_space<vmem>>, vector<8x1x128xf32>
    %281 = vector.shape_cast %280 : vector<8x1x128xf32> to vector<8x128xf32>
    %282 = vector.shape_cast %279 : vector<8x128xf32> to vector<8x1x128xf32>
    tpu.vector_store %arg15[%c0_59, %c7, %c0_60], %282 {strides = array<i32>} : memref<8x8x128xf32, #tpu.memory_space<vmem>>, vector<8x1x128xf32>,
    %c0_61 = arith.constant 0 : index
    %c0_62 = arith.constant 0 : index
    %c0_63 = arith.constant 0 : index
    %283 = vector.load %arg15[%c0_61, %c0_62, %c0_63] : memref<8x8x128xf32, #tpu.memory_space<vmem>>, vector<8x8x128xf32>
    %c0_64 = arith.constant 0 : index
    %c0_65 = arith.constant 0 : index
    %c0_66 = arith.constant 0 : index
    %284 = vector.load %arg2[%c0_64, %c0_65, %c0_66] : memref<8x128x128xf32, #tpu.memory_space<vmem>>, vector<8x128x128xf32>
    "tpu.trace_start"() <{level = 10 : i32, message = "bth,bsh->bts"}> : () -> ()
    %cst_67 = arith.constant dense<0.000000e+00> : vector<8x8x128xf32>
    %285 = tpu.matmul %283, %284, %cst_67 {dimension_numbers = #tpu.dot_dimension_numbers<[2], [2], [1], [1], [0, 0, 0, 1, 1, 1], [0], [0]>} : vector<8x8x128xf32>, vector<8x128x128xf32>, vector<8x8x128xf32> -> vector<8x8x128xf32>
    "tpu.trace_stop"() : () -> ()
    %c0_68 = arith.constant 0 : index
    %c0_69 = arith.constant 0 : index
    %286 = vector.load %arg4[%c0_68, %c0_69] : memref<1x128xf32, #tpu.memory_space<vmem>>, vector<1x128xf32>
    %287 = vector.shape_cast %286 : vector<1x128xf32> to vector<1x1x128xf32>
    %288 = vector.broadcast %287 : vector<1x1x128xf32> to vector<8x8x128xf32>
    %289 = arith.addf %285, %288 : vector<8x8x128xf32>
    %cst_70 = arith.constant dense<0xFF800000> : vector<8x8xf32>
    %290 = vector.multi_reduction <maximumf>, %289, %cst_70 [2] : vector<8x8x128xf32> to vector<8x8xf32>
    %291 = vector.shape_cast %290 : vector<8x8xf32> to vector<8x8x1xf32>
    %292 = vector.broadcast %291 : vector<8x8x1xf32> to vector<8x8x128xf32>
    %293 = arith.subf %289, %292 : vector<8x8x128xf32>
    %294 = math.exp %293 : vector<8x8x128xf32>
    %cst_71 = arith.constant dense<0.000000e+00> : vector<8x8xf32>
    %295 = vector.multi_reduction <add>, %294, %cst_71 [2] : vector<8x8x128xf32> to vector<8x8xf32>
    %296 = vector.shape_cast %295 : vector<8x8xf32> to vector<8x8x1xf32>
    %297 = vector.broadcast %296 : vector<8x8x1xf32> to vector<8x8x128xf32>
    %298 = arith.divf %294, %297 : vector<8x8x128xf32>
    "tpu.trace_start"() <{level = 10 : i32, message = "bts,bsh->bth"}> : () -> ()
    %cst_72 = arith.constant dense<0.000000e+00> : vector<8x8x128xf32>
    %299 = tpu.matmul %298, %284, %cst_72 {dimension_numbers = #tpu.dot_dimension_numbers<[2], [1], [1], [2], [0, 0, 0, 1, 1, 2], [0], [0]>} : vector<8x8x128xf32>, vector<8x128x128xf32>, vector<8x8x128xf32> -> vector<8x8x128xf32>
    "tpu.trace_stop"() : () -> ()
    %300 = vector.shape_cast %283 : vector<8x8x128xf32> to vector<64x128xf32>
    %301 = vector.shape_cast %299 : vector<8x8x128xf32> to vector<64x128xf32>
    %c0_73 = arith.constant 0 : index
    %c0_74 = arith.constant 0 : index
    %302 = vector.load %arg9[%c0_73, %c0_74] : memref<128x128xf32, #tpu.memory_space<vmem>>, vector<128x128xf32>
    %cst_75 = arith.constant dense<0.000000e+00> : vector<64x128xf32>
    %303 = tpu.matmul %301, %302, %cst_75 {dimension_numbers = #tpu.dot_dimension_numbers<[1], [0], [0], [1], [0, 0, 1, 1], [], []>} : vector<64x128xf32>, vector<128x128xf32>, vector<64x128xf32> -> vector<64x128xf32>
    %c0_76 = arith.constant 0 : index
    %c0_77 = arith.constant 0 : index
    %304 = vector.load %arg10[%c0_76, %c0_77] : memref<128x128xf32, #tpu.memory_space<vmem>>, vector<128x128xf32>
    %cst_78 = arith.constant dense<0.000000e+00> : vector<64x128xf32>
    %305 = tpu.matmul %300, %304, %cst_78 {dimension_numbers = #tpu.dot_dimension_numbers<[1], [0], [0], [1], [0, 0, 1, 1], [], []>} : vector<64x128xf32>, vector<128x128xf32>, vector<64x128xf32> -> vector<64x128xf32>
    %306 = arith.addf %303, %305 : vector<64x128xf32>
    %c0_79 = arith.constant 0 : index
    %c0_80 = arith.constant 0 : index
    %307 = vector.load %arg11[%c0_79, %c0_80] : memref<1x128xf32, #tpu.memory_space<vmem>>, vector<1x128xf32>
    %308 = vector.broadcast %307 : vector<1x128xf32> to vector<64x128xf32>
    %309 = arith.addf %306, %308 : vector<64x128xf32>
    %310 = math.tanh %309 : vector<64x128xf32>
    %c0_81 = arith.constant 0 : index
    %c0_82 = arith.constant 0 : index
    %311 = vector.load %arg12[%c0_81, %c0_82] : memref<128x128xf32, #tpu.memory_space<vmem>>, vector<128x128xf32>
    %cst_83 = arith.constant dense<0.000000e+00> : vector<64x128xf32>
    %312 = tpu.matmul %310, %311, %cst_83 {dimension_numbers = #tpu.dot_dimension_numbers<[1], [0], [0], [1], [0, 0, 1, 1], [], []>} : vector<64x128xf32>, vector<128x128xf32>, vector<64x128xf32> -> vector<64x128xf32>
    %c0_84 = arith.constant 0 : index
    %c0_85 = arith.constant 0 : index
    %313 = vector.load %arg13[%c0_84, %c0_85] : memref<1x128xf32, #tpu.memory_space<vmem>>, vector<1x128xf32>
    %314 = vector.broadcast %313 : vector<1x128xf32> to vector<64x128xf32>
    %315 = arith.addf %312, %314 : vector<64x128xf32>
    %cst_86 = arith.constant dense<0xFF800000> : vector<64xf32>
    %316 = vector.multi_reduction <maximumf>, %315, %cst_86 [1] : vector<64x128xf32> to vector<64xf32>
    %317 = vector.shape_cast %316 : vector<64xf32> to vector<64x1xf32>
    %318 = vector.broadcast %317 : vector<64x1xf32> to vector<64x128xf32>
    %319 = arith.subf %315, %318 : vector<64x128xf32>
    %320 = math.exp %319 : vector<64x128xf32>
    %cst_87 = arith.constant dense<0.000000e+00> : vector<64xf32>
    %321 = vector.multi_reduction <add>, %320, %cst_87 [1] : vector<64x128xf32> to vector<64xf32>
    %322 = vector.shape_cast %321 : vector<64xf32> to vector<64x1xf32>
    %323 = math.log %322 : vector<64x1xf32>
    %324 = arith.addf %317, %323 : vector<64x1xf32>
    %325 = vector.broadcast %324 : vector<64x1xf32> to vector<64x128xf32>
    %326 = arith.subf %315, %325 : vector<64x128xf32>
    %327 = vector.shape_cast %326 : vector<64x128xf32> to vector<8x8x128xf32>
    %c0_88 = arith.constant 0 : index
    %c0_89 = arith.constant 0 : index
    %c0_90 = arith.constant 0 : index
    %328 = vector.load %arg14[%c0_88, %c0_89, %c0_90] : memref<8x8x128xf32, #tpu.memory_space<vmem>>, vector<8x8x128xf32>
    tpu.vector_store %arg14[%c0_88, %c0_89, %c0_90], %327 {strides = array<i32>} : memref<8x8x128xf32, #tpu.memory_space<vmem>>, vector<8x8x128xf32>,
    return
  }
  func.func @transform_0(%arg0: i32) -> (i32, i32, i32) {
    %c0_i32 = arith.constant 0 : i32
    %c0_i32_0 = arith.constant 0 : i32
    %c0_i32_1 = arith.constant 0 : i32
    return %c0_i32, %arg0, %c0_i32_0 : i32, i32, i32
  }
  func.func @transform_1(%arg0: i32) -> (i32, i32, i32) {
    %c0_i32 = arith.constant 0 : i32
    %c0_i32_0 = arith.constant 0 : i32
    %c0_i32_1 = arith.constant 0 : i32
    return %arg0, %c0_i32, %c0_i32_0 : i32, i32, i32
  }
  func.func @transform_2(%arg0: i32) -> (i32, i32) {
    %c0_i32 = arith.constant 0 : i32
    %c0_i32_0 = arith.constant 0 : i32
    return %arg0, %c0_i32 : i32, i32
  }
  func.func @transform_3(%arg0: i32) -> (i32, i32) {
    %c0_i32 = arith.constant 0 : i32
    %c0_i32_0 = arith.constant 0 : i32
    %c0_i32_1 = arith.constant 0 : i32
    return %c0_i32, %c0_i32_0 : i32, i32
  }
  func.func @transform_4(%arg0: i32) -> (i32, i32) {
    %c0_i32 = arith.constant 0 : i32
    %c0_i32_0 = arith.constant 0 : i32
    %c0_i32_1 = arith.constant 0 : i32
    return %c0_i32, %c0_i32_0 : i32, i32
  }
  func.func @transform_5(%arg0: i32) -> (i32, i32) {
    %c0_i32 = arith.constant 0 : i32
    %c0_i32_0 = arith.constant 0 : i32
    %c0_i32_1 = arith.constant 0 : i32
    return %c0_i32, %c0_i32_0 : i32, i32
  }
  func.func @transform_6(%arg0: i32) -> (i32, i32) {
    %c0_i32 = arith.constant 0 : i32
    %c0_i32_0 = arith.constant 0 : i32
    %c0_i32_1 = arith.constant 0 : i32
    return %c0_i32, %c0_i32_0 : i32, i32
  }
  func.func @transform_7(%arg0: i32) -> (i32, i32) {
    %c0_i32 = arith.constant 0 : i32
    %c0_i32_0 = arith.constant 0 : i32
    %c0_i32_1 = arith.constant 0 : i32
    return %c0_i32, %c0_i32_0 : i32, i32
  }
  func.func @transform_8(%arg0: i32) -> (i32, i32) {
    %c0_i32 = arith.constant 0 : i32
    %c0_i32_0 = arith.constant 0 : i32
    %c0_i32_1 = arith.constant 0 : i32
    return %c0_i32, %c0_i32_0 : i32, i32
  }
  func.func @transform_9(%arg0: i32) -> (i32, i32) {
    %c0_i32 = arith.constant 0 : i32
    %c0_i32_0 = arith.constant 0 : i32
    %c0_i32_1 = arith.constant 0 : i32
    return %c0_i32, %c0_i32_0 : i32, i32
  }
  func.func @transform_10(%arg0: i32) -> (i32, i32) {
    %c0_i32 = arith.constant 0 : i32
    %c0_i32_0 = arith.constant 0 : i32
    %c0_i32_1 = arith.constant 0 : i32
    return %c0_i32, %c0_i32_0 : i32, i32
  }
  func.func @transform_11(%arg0: i32) -> (i32, i32) {
    %c0_i32 = arith.constant 0 : i32
    %c0_i32_0 = arith.constant 0 : i32
    %c0_i32_1 = arith.constant 0 : i32
    return %c0_i32, %c0_i32_0 : i32, i32
  }
  func.func @transform_12(%arg0: i32) -> (i32, i32) {
    %c0_i32 = arith.constant 0 : i32
    %c0_i32_0 = arith.constant 0 : i32
    %c0_i32_1 = arith.constant 0 : i32
    return %c0_i32, %c0_i32_0 : i32, i32
  }
  func.func @transform_13(%arg0: i32) -> (i32, i32, i32) {
    %c0_i32 = arith.constant 0 : i32
    %c0_i32_0 = arith.constant 0 : i32
    %c0_i32_1 = arith.constant 0 : i32
    return %arg0, %c0_i32, %c0_i32_0 : i32, i32, i32
  }
}

</mosaic_0001>

<llo_original>
// kernel: speller_forward.1
$region0: #{speller_forward.1}
  #allocation0 [shape = 'u32[]', space=smem, size = 0x4, offset = 0x4, fixed_abs, tag = 'smem constant byte address 0x4 - core index']
  #allocation1 [shape = 'u32[72,128]{1,0:T(1,128)}', space=vmem, size = 0x9000, scoped, tag = 'internal scratch']
  #allocation2 [shape = 'f32[8,8,128]{2,1,0:T(8,128)}', space=vmem, size = 0x8000, scoped, tag = 'scratch operand']
  %s0 = inlined_call_operand.vmem [shape: f32[8,8,128], index: 0, kind: input, shape index: {}]
  %s1 = inlined_call_operand.vmem [shape: f32[8,128,128], index: 1, kind: input, shape index: {}]
  %s2 = inlined_call_operand.vmem [shape: f32[8,128], index: 2, kind: input, shape index: {}]
  %s3 = inlined_call_operand.vmem [shape: f32[1,128], index: 3, kind: input, shape index: {}]
  %s4 = inlined_call_operand.vmem [shape: f32[128,384], index: 4, kind: input, shape index: {}]
  %s5 = inlined_call_operand.vmem [shape: f32[1,384], index: 5, kind: input, shape index: {}]
  %s6 = inlined_call_operand.vmem [shape: f32[128,384], index: 6, kind: input, shape index: {}]
  %s7 = inlined_call_operand.vmem [shape: f32[1,384], index: 7, kind: input, shape index: {}]
  %s8 = inlined_call_operand.vmem [shape: f32[128,128], index: 8, kind: input, shape index: {}]
  %s9 = inlined_call_operand.vmem [shape: f32[128,128], index: 9, kind: input, shape index: {}]
  %s10 = inlined_call_operand.vmem [shape: f32[1,128], index: 10, kind: input, shape index: {}]
  %s11 = inlined_call_operand.vmem [shape: f32[128,128], index: 11, kind: input, shape index: {}]
  %s12 = inlined_call_operand.vmem [shape: f32[1,128], index: 12, kind: input, shape index: {}]
  %s13 = inlined_call_operand.vmem [shape: f32[8,8,128], index: 13, kind: output, shape index: {}]
  %s14 = sld [smem:[#allocation0]]
  $region62: #{speller_forward.1} parent=0
    _
  %s16 = ssub.s32 1, %s14
  %s17 = scalar_select 0, %s16, %s14
  // Predicated region
  $region2: #{speller_forward.1} parent=0 // pred_check
    _
  $region3: #{speller_forward.1} parent=0 // pred_check_branch
    %19 = sbr.rel (0) target = $region5
  $region4: #{speller_forward.1} parent=0 // pred_region
    _
  $region5: #{speller_forward.1} parent=0 // pred_fallthru
    _
  // Predicated region
  $region6: #{speller_forward.1} parent=0 // pred_check
    _
  $region7: #{speller_forward.1} parent=0 // pred_check_branch
    %21 = sbr.rel (0) target = $region9
  $region8: #{speller_forward.1} parent=0 // pred_region
    _
  $region9: #{speller_forward.1} parent=0 // pred_fallthru
    _
  // Predicated region
  $region10: #{speller_forward.1} parent=0 // pred_check
    _
  $region11: #{speller_forward.1} parent=0 // pred_check_branch
    %23 = sbr.rel (0) target = $region13
  $region12: #{speller_forward.1} parent=0 // pred_region
    _
  $region13: #{speller_forward.1} parent=0 // pred_fallthru
    _
  // Predicated region
  $region14: #{speller_forward.1} parent=0 // pred_check
    _
  $region15: #{speller_forward.1} parent=0 // pred_check_branch
    %25 = sbr.rel (0) target = $region17
  $region16: #{speller_forward.1} parent=0 // pred_region
    _
  $region17: #{speller_forward.1} parent=0 // pred_fallthru
    _
  // Predicated region
  $region18: #{speller_forward.1} parent=0 // pred_check
    _
  $region19: #{speller_forward.1} parent=0 // pred_check_branch
    %27 = sbr.rel (0) target = $region21
  $region20: #{speller_forward.1} parent=0 // pred_region
    _
  $region21: #{speller_forward.1} parent=0 // pred_fallthru
    _
  // Predicated region
  $region22: #{speller_forward.1} parent=0 // pred_check
    _
  $region23: #{speller_forward.1} parent=0 // pred_check_branch
    %29 = sbr.rel (0) target = $region25
  $region24: #{speller_forward.1} parent=0 // pred_region
    _
  $region25: #{speller_forward.1} parent=0 // pred_fallthru
    _
  // Predicated region
  $region26: #{speller_forward.1} parent=0 // pred_check
    _
  $region27: #{speller_forward.1} parent=0 // pred_check_branch
    %31 = sbr.rel (0) target = $region29
  $region28: #{speller_forward.1} parent=0 // pred_region
    _
  $region29: #{speller_forward.1} parent=0 // pred_fallthru
    _
  // Predicated region
  $region30: #{speller_forward.1} parent=0 // pred_check
    _
  $region31: #{speller_forward.1} parent=0 // pred_check_branch
    %33 = sbr.rel (0) target = $region33
  $region32: #{speller_forward.1} parent=0 // pred_region
    _
  $region33: #{speller_forward.1} parent=0 // pred_fallthru
    _
  // Predicated region
  $region34: #{speller_forward.1} parent=0 // pred_check
    _
  $region35: #{speller_forward.1} parent=0 // pred_check_branch
    %35 = sbr.rel (0) target = $region37
  $region36: #{speller_forward.1} parent=0 // pred_region
    _
  $region37: #{speller_forward.1} parent=0 // pred_fallthru
    _
  // Predicated region
  $region38: #{speller_forward.1} parent=0 // pred_check
    _
  $region39: #{speller_forward.1} parent=0 // pred_check_branch
    %37 = sbr.rel (0) target = $region41
  $region40: #{speller_forward.1} parent=0 // pred_region
    _
  $region41: #{speller_forward.1} parent=0 // pred_fallthru
    _
  // Predicated region
  $region42: #{speller_forward.1} parent=0 // pred_check
    _
  $region43: #{speller_forward.1} parent=0 // pred_check_branch
    %39 = sbr.rel (0) target = $region45
  $region44: #{speller_forward.1} parent=0 // pred_region
    _
  $region45: #{speller_forward.1} parent=0 // pred_fallthru
    _
  // Predicated region
  $region46: #{speller_forward.1} parent=0 // pred_check
    _
  $region47: #{speller_forward.1} parent=0 // pred_check_branch
    %41 = sbr.rel (0) target = $region49
  $region48: #{speller_forward.1} parent=0 // pred_region
    _
  $region49: #{speller_forward.1} parent=0 // pred_fallthru
    _
  // Predicated region
  $region50: #{speller_forward.1} parent=0 // pred_check
    _
  $region51: #{speller_forward.1} parent=0 // pred_check_branch
    %43 = sbr.rel (0) target = $region53
  $region52: #{speller_forward.1} parent=0 // pred_region
    _
  $region53: #{speller_forward.1} parent=0 // pred_fallthru
    _
  %v44 = vld [vmem:[%s0] sm:$0xff]
  %v45 = vld [vmem:[%s0 + $0x8] sm:$0xff]
  %v46 = vld [vmem:[%s0 + $0x10] sm:$0xff]
  %v47 = vld [vmem:[%s0 + $0x18] sm:$0xff]
  %v48 = vld [vmem:[%s0 + $0x20] sm:$0xff]
  %v49 = vld [vmem:[%s0 + $0x28] sm:$0xff]
  %v50 = vld [vmem:[%s0 + $0x30] sm:$0xff]
  %v51 = vld [vmem:[%s0 + $0x38] sm:$0xff]
  %v52 = vld [vmem:[%s4] sm:$0xff]
  %v53 = vld [vmem:[%s4 + $0x8] sm:$0xff]
  %v54 = vld [vmem:[%s4 + $0x10] sm:$0xff]
  %v55 = vld [vmem:[%s4 + $0x18] sm:$0xff]
  %v56 = vld [vmem:[%s4 + $0x20] sm:$0xff]
  %v57 = vld [vmem:[%s4 + $0x28] sm:$0xff]
  %v58 = vld [vmem:[%s4 + $0x30] sm:$0xff]
  %v59 = vld [vmem:[%s4 + $0x38] sm:$0xff]
  %v60 = vld [vmem:[%s4 + $0x40] sm:$0xff]
  %v61 = vld [vmem:[%s4 + $0x48] sm:$0xff]
  %v62 = vld [vmem:[%s4 + $0x50] sm:$0xff]
  %v63 = vld [vmem:[%s4 + $0x58] sm:$0xff]
  %v64 = vld [vmem:[%s4 + $0x60] sm:$0xff]
  %v65 = vld [vmem:[%s4 + $0x68] sm:$0xff]
  %v66 = vld [vmem:[%s4 + $0x70] sm:$0xff]
  %v67 = vld [vmem:[%s4 + $0x78] sm:$0xff]
  %v68 = vld [vmem:[%s4 + $0x80] sm:$0xff]
  %v69 = vld [vmem:[%s4 + $0x88] sm:$0xff]
  %v70 = vld [vmem:[%s4 + $0x90] sm:$0xff]
  %v71 = vld [vmem:[%s4 + $0x98] sm:$0xff]
  %v72 = vld [vmem:[%s4 + $0xa0] sm:$0xff]
  %v73 = vld [vmem:[%s4 + $0xa8] sm:$0xff]
  %v74 = vld [vmem:[%s4 + $0xb0] sm:$0xff]
  %v75 = vld [vmem:[%s4 + $0xb8] sm:$0xff]
  %v76 = vld [vmem:[%s4 + $0xc0] sm:$0xff]
  %v77 = vld [vmem:[%s4 + $0xc8] sm:$0xff]
  %v78 = vld [vmem:[%s4 + $0xd0] sm:$0xff]
  %v79 = vld [vmem:[%s4 + $0xd8] sm:$0xff]
  %v80 = vld [vmem:[%s4 + $0xe0] sm:$0xff]
  %v81 = vld [vmem:[%s4 + $0xe8] sm:$0xff]
  %v82 = vld [vmem:[%s4 + $0xf0] sm:$0xff]
  %v83 = vld [vmem:[%s4 + $0xf8] sm:$0xff]
  %v84 = vld [vmem:[%s4 + $0x100] sm:$0xff]
  %v85 = vld [vmem:[%s4 + $0x108] sm:$0xff]
  %v86 = vld [vmem:[%s4 + $0x110] sm:$0xff]
  %v87 = vld [vmem:[%s4 + $0x118] sm:$0xff]
  %v88 = vld [vmem:[%s4 + $0x120] sm:$0xff]
  %v89 = vld [vmem:[%s4 + $0x128] sm:$0xff]
  %v90 = vld [vmem:[%s4 + $0x130] sm:$0xff]
  %v91 = vld [vmem:[%s4 + $0x138] sm:$0xff]
  %v92 = vld [vmem:[%s4 + $0x140] sm:$0xff]
  %v93 = vld [vmem:[%s4 + $0x148] sm:$0xff]
  %v94 = vld [vmem:[%s4 + $0x150] sm:$0xff]
  %v95 = vld [vmem:[%s4 + $0x158] sm:$0xff]
  %v96 = vld [vmem:[%s4 + $0x160] sm:$0xff]
  %v97 = vld [vmem:[%s4 + $0x168] sm:$0xff]
  %v98 = vld [vmem:[%s4 + $0x170] sm:$0xff]
  %v99 = vld [vmem:[%s4 + $0x178] sm:$0xff]
  %v100 = vld [vmem:[%s5] sm:$0x7]
  %v102 = vperm.slane %v100, 0
  %v103 = vperm.slane %v100, 1
  %v104 = vperm.slane %v100, 2
  %108 = vmatpush.msra.mxu0 %v97
  %109 = vmatpush.msra.mxu0 %v94
  %110 = vmatpush.msra.mxu0 %v91
  %111 = vmatpush.msra.mxu0 %v88
  %112 = vmatpush.msra.mxu0 %v85
  %113 = vmatpush.msra.mxu0 %v82
  %114 = vmatpush.msra.mxu0 %v79
  %115 = vmatpush.msra.mxu0 %v76
  %116 = vmatpush.msra.mxu0 %v73
  %117 = vmatpush.msra.mxu0 %v70
  %118 = vmatpush.msra.mxu0 %v67
  %119 = vmatpush.msra.mxu0 %v64
  %120 = vmatpush.msra.mxu0 %v61
  %121 = vmatpush.msra.mxu0 %v58
  %122 = vmatpush.msra.mxu0 %v55
  %123 = vmatpush.msra.mxu0 %v52
  %124 = vmatmul.f32.gmra.mxu0 %v44
  %v125 = vpop.f32.mrf.mxu0
  %v126 = vadd.f32 %v102, %v125
  %127 = vmatmul.f32.gmra.mxu0 %v45
  %v128 = vpop.f32.mrf.mxu0
  %v129 = vadd.f32 %v102, %v128
  %130 = vmatmul.f32.gmra.mxu0 %v46
  %v131 = vpop.f32.mrf.mxu0
  %v132 = vadd.f32 %v102, %v131
  %133 = vmatmul.f32.gmra.mxu0 %v47
  %v134 = vpop.f32.mrf.mxu0
  %v135 = vadd.f32 %v102, %v134
  %136 = vmatmul.f32.gmra.mxu0 %v48
  %v137 = vpop.f32.mrf.mxu0
  %v138 = vadd.f32 %v102, %v137
  %139 = vmatmul.f32.gmra.mxu0 %v49
  %v140 = vpop.f32.mrf.mxu0
  %v141 = vadd.f32 %v102, %v140
  %142 = vmatmul.f32.gmra.mxu0 %v50
  %v143 = vpop.f32.mrf.mxu0
  %v144 = vadd.f32 %v102, %v143
  %145 = vmatmul.f32.gmra.mxu0 %v51
  %v146 = vpop.f32.mrf.mxu0
  %v147 = vadd.f32 %v102, %v146
  %148 = vdwg.mxu0
  %149 = vmatpush.msra.mxu0 %v98
  %150 = vmatpush.msra.mxu0 %v95
  %151 = vmatpush.msra.mxu0 %v92
  %152 = vmatpush.msra.mxu0 %v89
  %153 = vmatpush.msra.mxu0 %v86
  %154 = vmatpush.msra.mxu0 %v83
  %155 = vmatpush.msra.mxu0 %v80
  %156 = vmatpush.msra.mxu0 %v77
  %157 = vmatpush.msra.mxu0 %v74
  %158 = vmatpush.msra.mxu0 %v71
  %159 = vmatpush.msra.mxu0 %v68
  %160 = vmatpush.msra.mxu0 %v65
  %161 = vmatpush.msra.mxu0 %v62
  %162 = vmatpush.msra.mxu0 %v59
  %163 = vmatpush.msra.mxu0 %v56
  %164 = vmatpush.msra.mxu0 %v53
  %165 = vmatmul.f32.gmra.mxu0 %v44
  %v166 = vpop.f32.mrf.mxu0
  %v167 = vadd.f32 %v103, %v166
  %168 = vmatmul.f32.gmra.mxu0 %v45
  %v169 = vpop.f32.mrf.mxu0
  %v170 = vadd.f32 %v103, %v169
  %171 = vmatmul.f32.gmra.mxu0 %v46
  %v172 = vpop.f32.mrf.mxu0
  %v173 = vadd.f32 %v103, %v172
  %174 = vmatmul.f32.gmra.mxu0 %v47
  %v175 = vpop.f32.mrf.mxu0
  %v176 = vadd.f32 %v103, %v175
  %177 = vmatmul.f32.gmra.mxu0 %v48
  %v178 = vpop.f32.mrf.mxu0
  %v179 = vadd.f32 %v103, %v178
  %180 = vmatmul.f32.gmra.mxu0 %v49
  %v181 = vpop.f32.mrf.mxu0
  %v182 = vadd.f32 %v103, %v181
  %183 = vmatmul.f32.gmra.mxu0 %v50
  %v184 = vpop.f32.mrf.mxu0
  %v185 = vadd.f32 %v103, %v184
  %186 = vmatmul.f32.gmra.mxu0 %v51
  %v187 = vpop.f32.mrf.mxu0
  %v188 = vadd.f32 %v103, %v187
  %189 = vdwg.mxu0
  %190 = vmatpush.msra.mxu0 %v99
  %191 = vmatpush.msra.mxu0 %v96
  %192 = vmatpush.msra.mxu0 %v93
  %193 = vmatpush.msra.mxu0 %v90
  %194 = vmatpush.msra.mxu0 %v87
  %195 = vmatpush.msra.mxu0 %v84
  %196 = vmatpush.msra.mxu0 %v81
  %197 = vmatpush.msra.mxu0 %v78
  %198 = vmatpush.msra.mxu0 %v75
  %199 = vmatpush.msra.mxu0 %v72
  %200 = vmatpush.msra.mxu0 %v69
  %201 = vmatpush.msra.mxu0 %v66
  %202 = vmatpush.msra.mxu0 %v63
  %203 = vmatpush.msra.mxu0 %v60
  %204 = vmatpush.msra.mxu0 %v57
  %205 = vmatpush.msra.mxu0 %v54
  %206 = vmatmul.f32.gmra.mxu0 %v44
  %v207 = vpop.f32.mrf.mxu0
  %v208 = vadd.f32 %v104, %v207
  %209 = vmatmul.f32.gmra.mxu0 %v45
  %v210 = vpop.f32.mrf.mxu0
  %v211 = vadd.f32 %v104, %v210
  %212 = vmatmul.f32.gmra.mxu0 %v46
  %v213 = vpop.f32.mrf.mxu0
  %v214 = vadd.f32 %v104, %v213
  %215 = vmatmul.f32.gmra.mxu0 %v47
  %v216 = vpop.f32.mrf.mxu0
  %v217 = vadd.f32 %v104, %v216
  %218 = vmatmul.f32.gmra.mxu0 %v48
  %v219 = vpop.f32.mrf.mxu0
  %v220 = vadd.f32 %v104, %v219
  %221 = vmatmul.f32.gmra.mxu0 %v49
  %v222 = vpop.f32.mrf.mxu0
  %v223 = vadd.f32 %v104, %v222
  %224 = vmatmul.f32.gmra.mxu0 %v50
  %v225 = vpop.f32.mrf.mxu0
  %v226 = vadd.f32 %v104, %v225
  %227 = vmatmul.f32.gmra.mxu0 %v51
  %v228 = vpop.f32.mrf.mxu0
  %v229 = vadd.f32 %v104, %v228
  %230 = vdwg.mxu0
  %v231 = vld [vmem:[%s6] sm:$0xff]
  %v232 = vld [vmem:[%s6 + $0x8] sm:$0xff]
  %v233 = vld [vmem:[%s6 + $0x10] sm:$0xff]
  %v234 = vld [vmem:[%s6 + $0x18] sm:$0xff]
  %v235 = vld [vmem:[%s6 + $0x20] sm:$0xff]
  %v236 = vld [vmem:[%s6 + $0x28] sm:$0xff]
  %v237 = vld [vmem:[%s6 + $0x30] sm:$0xff]
  %v238 = vld [vmem:[%s6 + $0x38] sm:$0xff]
  %v239 = vld [vmem:[%s6 + $0x40] sm:$0xff]
  %v240 = vld [vmem:[%s6 + $0x48] sm:$0xff]
  %v241 = vld [vmem:[%s6 + $0x50] sm:$0xff]
  %v242 = vld [vmem:[%s6 + $0x58] sm:$0xff]
  %v243 = vld [vmem:[%s6 + $0x60] sm:$0xff]
  %v244 = vld [vmem:[%s6 + $0x68] sm:$0xff]
  %v245 = vld [vmem:[%s6 + $0x70] sm:$0xff]
  %v246 = vld [vmem:[%s6 + $0x78] sm:$0xff]
  %v247 = vld [vmem:[%s6 + $0x80] sm:$0xff]
  %v248 = vld [vmem:[%s6 + $0x88] sm:$0xff]
  %v249 = vld [vmem:[%s6 + $0x90] sm:$0xff]
  %v250 = vld [vmem:[%s6 + $0x98] sm:$0xff]
  %v251 = vld [vmem:[%s6 + $0xa0] sm:$0xff]
  %v252 = vld [vmem:[%s6 + $0xa8] sm:$0xff]
  %v253 = vld [vmem:[%s6 + $0xb0] sm:$0xff]
  %v254 = vld [vmem:[%s6 + $0xb8] sm:$0xff]
  %v255 = vld [vmem:[%s6 + $0xc0] sm:$0xff]
  %v256 = vld [vmem:[%s6 + $0xc8] sm:$0xff]
  %v257 = vld [vmem:[%s6 + $0xd0] sm:$0xff]
  %v258 = vld [vmem:[%s6 + $0xd8] sm:$0xff]
  %v259 = vld [vmem:[%s6 + $0xe0] sm:$0xff]
  %v260 = vld [vmem:[%s6 + $0xe8] sm:$0xff]
  %v261 = vld [vmem:[%s6 + $0xf0] sm:$0xff]
  %v262 = vld [vmem:[%s6 + $0xf8] sm:$0xff]
  %v263 = vld [vmem:[%s6 + $0x100] sm:$0xff]
  %v264 = vld [vmem:[%s6 + $0x108] sm:$0xff]
  %v265 = vld [vmem:[%s6 + $0x110] sm:$0xff]
  %v266 = vld [vmem:[%s6 + $0x118] sm:$0xff]
  %v267 = vld [vmem:[%s6 + $0x120] sm:$0xff]
  %v268 = vld [vmem:[%s6 + $0x128] sm:$0xff]
  %v269 = vld [vmem:[%s6 + $0x130] sm:$0xff]
  %v270 = vld [vmem:[%s6 + $0x138] sm:$0xff]
  %v271 = vld [vmem:[%s6 + $0x140] sm:$0xff]
  %v272 = vld [vmem:[%s6 + $0x148] sm:$0xff]
  %v273 = vld [vmem:[%s6 + $0x150] sm:$0xff]
  %v274 = vld [vmem:[%s6 + $0x158] sm:$0xff]
  %v275 = vld [vmem:[%s6 + $0x160] sm:$0xff]
  %v276 = vld [vmem:[%s6 + $0x168] sm:$0xff]
  %v277 = vld [vmem:[%s6 + $0x170] sm:$0xff]
  %v278 = vld [vmem:[%s6 + $0x178] sm:$0xff]
  %v279 = vld [vmem:[%s7] sm:$0x7]
  %v280 = vld [vmem:[%s2] sm:$0xff]
  %v282 = vperm.slane %v279, 0
  %v283 = vperm.slane %v279, 1
  %v284 = vperm.slane %v279, 2
  %288 = vmatpush.msra.mxu0 %v276
  %289 = vmatpush.msra.mxu0 %v273
  %290 = vmatpush.msra.mxu0 %v270
  %291 = vmatpush.msra.mxu0 %v267
  %292 = vmatpush.msra.mxu0 %v264
  %293 = vmatpush.msra.mxu0 %v261
  %294 = vmatpush.msra.mxu0 %v258
  %295 = vmatpush.msra.mxu0 %v255
  %296 = vmatpush.msra.mxu0 %v252
  %297 = vmatpush.msra.mxu0 %v249
  %298 = vmatpush.msra.mxu0 %v246
  %299 = vmatpush.msra.mxu0 %v243
  %300 = vmatpush.msra.mxu0 %v240
  %301 = vmatpush.msra.mxu0 %v237
  %302 = vmatpush.msra.mxu0 %v234
  %303 = vmatpush.msra.mxu0 %v231
  %304 = vmatmul.f32.gmra.mxu0 %v280
  %v305 = vpop.f32.mrf.mxu0
  %v306 = vadd.f32 %v282, %v305
  %307 = vdwg.mxu0
  %308 = vmatpush.msra.mxu0 %v277
  %309 = vmatpush.msra.mxu0 %v274
  %310 = vmatpush.msra.mxu0 %v271
  %311 = vmatpush.msra.mxu0 %v268
  %312 = vmatpush.msra.mxu0 %v265
  %313 = vmatpush.msra.mxu0 %v262
  %314 = vmatpush.msra.mxu0 %v259
  %315 = vmatpush.msra.mxu0 %v256
  %316 = vmatpush.msra.mxu0 %v253
  %317 = vmatpush.msra.mxu0 %v250
  %318 = vmatpush.msra.mxu0 %v247
  %319 = vmatpush.msra.mxu0 %v244
  %320 = vmatpush.msra.mxu0 %v241
  %321 = vmatpush.msra.mxu0 %v238
  %322 = vmatpush.msra.mxu0 %v235
  %323 = vmatpush.msra.mxu0 %v232
  %324 = vmatmul.f32.gmra.mxu0 %v280
  %v325 = vpop.f32.mrf.mxu0
  %v326 = vadd.f32 %v283, %v325
  %327 = vdwg.mxu0
  %328 = vmatpush.msra.mxu0 %v278
  %329 = vmatpush.msra.mxu0 %v275
  %330 = vmatpush.msra.mxu0 %v272
  %331 = vmatpush.msra.mxu0 %v269
  %332 = vmatpush.msra.mxu0 %v266
  %333 = vmatpush.msra.mxu0 %v263
  %334 = vmatpush.msra.mxu0 %v260
  %335 = vmatpush.msra.mxu0 %v257
  %336 = vmatpush.msra.mxu0 %v254
  %337 = vmatpush.msra.mxu0 %v251
  %338 = vmatpush.msra.mxu0 %v248
  %339 = vmatpush.msra.mxu0 %v245
  %340 = vmatpush.msra.mxu0 %v242
  %341 = vmatpush.msra.mxu0 %v239
  %342 = vmatpush.msra.mxu0 %v236
  %343 = vmatpush.msra.mxu0 %v233
  %344 = vmatmul.f32.gmra.mxu0 %v280
  %v345 = vpop.f32.mrf.mxu0
  %v346 = vadd.f32 %v284, %v345
  %347 = vdwg.mxu0
  %v348 = vadd.f32 %v126, %v306
  %v349 = vxor.u32 %v348, 2147483648
  %v350 = vmul.f32 %v349, 1.442695
  %v351 = vpow.pop %v350
  %v352 = vadd.f32 %v351, 1.0
  %v353 = vrcp.pop %v352
  %v354 = vmul.f32 %v352, %v353
  %v355 = vsub.f32 1.0, %v354
  %v356 = vmul.f32 %v353, %v355
  %v357 = vadd.f32 %v353, %v356
  %vm358 = vweird.f32 %v352
  %vm359 = vweird.f32 %v353
  %vm360 = vmor %vm358, %vm359
  %v361 = vsel %vm360, %v353, %v357
  %v362 = vand.u32 2147483647, %v352
  %vm363 = vcmp.eq.f32.partialorder %v362, 8.507059e+37
  %v364 = vand.u32 %v352, 2147483648
  %v365 = vor.u32 1.1754944e-38, %v364
  %v366 = vsel %vm363, %v365, %v361
  %v367 = vmul.f32 1.0, %v366
  %v368 = vadd.f32 %v167, %v326
  %v369 = vxor.u32 %v368, 2147483648
  %v370 = vmul.f32 %v369, 1.442695
  %v371 = vpow.pop %v370
  %v372 = vadd.f32 %v371, 1.0
  %v373 = vrcp.pop %v372
  %v374 = vmul.f32 %v372, %v373
  %v375 = vsub.f32 1.0, %v374
  %v376 = vmul.f32 %v373, %v375
  %v377 = vadd.f32 %v373, %v376
  %vm378 = vweird.f32 %v372
  %vm379 = vweird.f32 %v373
  %vm380 = vmor %vm378, %vm379
  %v381 = vsel %vm380, %v373, %v377
  %v382 = vand.u32 2147483647, %v372
  %vm383 = vcmp.eq.f32.partialorder %v382, 8.507059e+37
  %v384 = vand.u32 %v372, 2147483648
  %v385 = vor.u32 1.1754944e-38, %v384
  %v386 = vsel %vm383, %v385, %v381
  %v387 = vmul.f32 1.0, %v386
  %v388 = vmul.f32 %v367, %v346
  %v389 = vadd.f32 %v208, %v388
  %v390 = vtanh.pop %v389
  %v391 = vsub.f32 1.0, %v387
  %v392 = vmul.f32 %v391, %v390
  %v393 = vmul.f32 %v387, %v280
  %v394 = vadd.f32 %v392, %v393
  %v396 = vrot.slane %v394, 1
  %v397 = vrot.slane %v394, 2
  %v398 = vrot.slane %v394, 3
  %v399 = vrot.slane %v394, 4
  %v400 = vrot.slane %v394, 5
  %v401 = vrot.slane %v394, 6
  %v402 = vrot.slane %v394, 7
  %410 = vst [vmem:[#allocation2] sm:$0x1] %v394
  %411 = vst [vmem:[#allocation2 + $0x8] sm:$0x1] %v396
  %412 = vst [vmem:[#allocation2 + $0x10] sm:$0x1] %v397
  %413 = vst [vmem:[#allocation2 + $0x18] sm:$0x1] %v398
  %414 = vst [vmem:[#allocation2 + $0x20] sm:$0x1] %v399
  %415 = vst [vmem:[#allocation2 + $0x28] sm:$0x1] %v400
  %416 = vst [vmem:[#allocation2 + $0x30] sm:$0x1] %v401
  %417 = vst [vmem:[#allocation2 + $0x38] sm:$0x1] %v402
  %418 = vmatpush.msra.mxu0 %v276
  %419 = vmatpush.msra.mxu0 %v273
  %420 = vmatpush.msra.mxu0 %v270
  %421 = vmatpush.msra.mxu0 %v267
  %422 = vmatpush.msra.mxu0 %v264
  %423 = vmatpush.msra.mxu0 %v261
  %424 = vmatpush.msra.mxu0 %v258
  %425 = vmatpush.msra.mxu0 %v255
  %426 = vmatpush.msra.mxu0 %v252
  %427 = vmatpush.msra.mxu0 %v249
  %428 = vmatpush.msra.mxu0 %v246
  %429 = vmatpush.msra.mxu0 %v243
  %430 = vmatpush.msra.mxu0 %v240
  %431 = vmatpush.msra.mxu0 %v237
  %432 = vmatpush.msra.mxu0 %v234
  %433 = vmatpush.msra.mxu0 %v231
  %434 = vmatmul.f32.gmra.mxu0 %v394
  %v435 = vpop.f32.mrf.mxu0
  %v436 = vadd.f32 %v282, %v435
  %437 = vdwg.mxu0
  %438 = vmatpush.msra.mxu0 %v277
  %439 = vmatpush.msra.mxu0 %v274
  %440 = vmatpush.msra.mxu0 %v271
  %441 = vmatpush.msra.mxu0 %v268
  %442 = vmatpush.msra.mxu0 %v265
  %443 = vmatpush.msra.mxu0 %v262
  %444 = vmatpush.msra.mxu0 %v259
  %445 = vmatpush.msra.mxu0 %v256
  %446 = vmatpush.msra.mxu0 %v253
  %447 = vmatpush.msra.mxu0 %v250
  %448 = vmatpush.msra.mxu0 %v247
  %449 = vmatpush.msra.mxu0 %v244
  %450 = vmatpush.msra.mxu0 %v241
  %451 = vmatpush.msra.mxu0 %v238
  %452 = vmatpush.msra.mxu0 %v235
  %453 = vmatpush.msra.mxu0 %v232
  %454 = vmatmul.f32.gmra.mxu0 %v394
  %v455 = vpop.f32.mrf.mxu0
  %v456 = vadd.f32 %v283, %v455
  %457 = vdwg.mxu0
  %458 = vmatpush.msra.mxu0 %v278
  %459 = vmatpush.msra.mxu0 %v275
  %460 = vmatpush.msra.mxu0 %v272
  %461 = vmatpush.msra.mxu0 %v269
  %462 = vmatpush.msra.mxu0 %v266
  %463 = vmatpush.msra.mxu0 %v263
  %464 = vmatpush.msra.mxu0 %v260
  %465 = vmatpush.msra.mxu0 %v257
  %466 = vmatpush.msra.mxu0 %v254
  %467 = vmatpush.msra.mxu0 %v251
  %468 = vmatpush.msra.mxu0 %v248
  %469 = vmatpush.msra.mxu0 %v245
  %470 = vmatpush.msra.mxu0 %v242
  %471 = vmatpush.msra.mxu0 %v239
  %472 = vmatpush.msra.mxu0 %v236
  %473 = vmatpush.msra.mxu0 %v233
  %474 = vmatmul.f32.gmra.mxu0 %v394
  %v475 = vpop.f32.mrf.mxu0
  %v476 = vadd.f32 %v284, %v475
  %477 = vdwg.mxu0
  %v478 = vadd.f32 %v129, %v436
  %v479 = vxor.u32 %v478, 2147483648
  %v480 = vmul.f32 %v479, 1.442695
  %v481 = vpow.pop %v480
  %v482 = vadd.f32 %v481, 1.0
  %v483 = vrcp.pop %v482
  %v484 = vmul.f32 %v482, %v483
  %v485 = vsub.f32 1.0, %v484
  %v486 = vmul.f32 %v483, %v485
  %v487 = vadd.f32 %v483, %v486
  %vm488 = vweird.f32 %v482
  %vm489 = vweird.f32 %v483
  %vm490 = vmor %vm488, %vm489
  %v491 = vsel %vm490, %v483, %v487
  %v492 = vand.u32 2147483647, %v482
  %vm493 = vcmp.eq.f32.partialorder %v492, 8.507059e+37
  %v494 = vand.u32 %v482, 2147483648
  %v495 = vor.u32 1.1754944e-38, %v494
  %v496 = vsel %vm493, %v495, %v491
  %v497 = vmul.f32 1.0, %v496
  %v498 = vadd.f32 %v170, %v456
  %v499 = vxor.u32 %v498, 2147483648
  %v500 = vmul.f32 %v499, 1.442695
  %v501 = vpow.pop %v500
  %v502 = vadd.f32 %v501, 1.0
  %v503 = vrcp.pop %v502
  %v504 = vmul.f32 %v502, %v503
  %v505 = vsub.f32 1.0, %v504
  %v506 = vmul.f32 %v503, %v505
  %v507 = vadd.f32 %v503, %v506
  %vm508 = vweird.f32 %v502
  %vm509 = vweird.f32 %v503
  %vm510 = vmor %vm508, %vm509
  %v511 = vsel %vm510, %v503, %v507
  %v512 = vand.u32 2147483647, %v502
  %vm513 = vcmp.eq.f32.partialorder %v512, 8.507059e+37
  %v514 = vand.u32 %v502, 2147483648
  %v515 = vor.u32 1.1754944e-38, %v514
  %v516 = vsel %vm513, %v515, %v511
  %v517 = vmul.f32 1.0, %v516
  %v518 = vmul.f32 %v497, %v476
  %v519 = vadd.f32 %v211, %v518
  %v520 = vtanh.pop %v519
  %v521 = vsub.f32 1.0, %v517
  %v522 = vmul.f32 %v521, %v520
  %v523 = vmul.f32 %v517, %v394
  %v524 = vadd.f32 %v522, %v523
  %v526 = vrot.slane %v524, 1
  %v527 = vrot.slane %v524, 2
  %v528 = vrot.slane %v524, 3
  %v529 = vrot.slane %v524, 4
  %v530 = vrot.slane %v524, 5
  %v531 = vrot.slane %v524, 6
  %v532 = vrot.slane %v524, 7
  %540 = vst [vmem:[#allocation2 + $0x1] sm:$0x1] %v524
  %541 = vst [vmem:[#allocation2 + $0x9] sm:$0x1] %v526
  %542 = vst [vmem:[#allocation2 + $0x11] sm:$0x1] %v527
  %543 = vst [vmem:[#allocation2 + $0x19] sm:$0x1] %v528
  %544 = vst [vmem:[#allocation2 + $0x21] sm:$0x1] %v529
  %545 = vst [vmem:[#allocation2 + $0x29] sm:$0x1] %v530
  %546 = vst [vmem:[#allocation2 + $0x31] sm:$0x1] %v531
  %547 = vst [vmem:[#allocation2 + $0x39] sm:$0x1] %v532
  %548 = vmatpush.msra.mxu0 %v276
  %549 = vmatpush.msra.mxu0 %v273
  %550 = vmatpush.msra.mxu0 %v270
  %551 = vmatpush.msra.mxu0 %v267
  %552 = vmatpush.msra.mxu0 %v264
  %553 = vmatpush.msra.mxu0 %v261
  %554 = vmatpush.msra.mxu0 %v258
  %555 = vmatpush.msra.mxu0 %v255
  %556 = vmatpush.msra.mxu0 %v252
  %557 = vmatpush.msra.mxu0 %v249
  %558 = vmatpush.msra.mxu0 %v246
  %559 = vmatpush.msra.mxu0 %v243
  %560 = vmatpush.msra.mxu0 %v240
  %561 = vmatpush.msra.mxu0 %v237
  %562 = vmatpush.msra.mxu0 %v234
  %563 = vmatpush.msra.mxu0 %v231
  %564 = vmatmul.f32.gmra.mxu0 %v524
  %v565 = vpop.f32.mrf.mxu0
  %v566 = vadd.f32 %v282, %v565
  %567 = vdwg.mxu0
  %568 = vmatpush.msra.mxu0 %v277
  %569 = vmatpush.msra.mxu0 %v274
  %570 = vmatpush.msra.mxu0 %v271
  %571 = vmatpush.msra.mxu0 %v268
  %572 = vmatpush.msra.mxu0 %v265
  %573 = vmatpush.msra.mxu0 %v262
  %574 = vmatpush.msra.mxu0 %v259
  %575 = vmatpush.msra.mxu0 %v256
  %576 = vmatpush.msra.mxu0 %v253
  %577 = vmatpush.msra.mxu0 %v250
  %578 = vmatpush.msra.mxu0 %v247
  %579 = vmatpush.msra.mxu0 %v244
  %580 = vmatpush.msra.mxu0 %v241
  %581 = vmatpush.msra.mxu0 %v238
  %582 = vmatpush.msra.mxu0 %v235
  %583 = vmatpush.msra.mxu0 %v232
  %584 = vmatmul.f32.gmra.mxu0 %v524
  %v585 = vpop.f32.mrf.mxu0
  %v586 = vadd.f32 %v283, %v585
  %587 = vdwg.mxu0
  %588 = vmatpush.msra.mxu0 %v278
  %589 = vmatpush.msra.mxu0 %v275
  %590 = vmatpush.msra.mxu0 %v272
  %591 = vmatpush.msra.mxu0 %v269
  %592 = vmatpush.msra.mxu0 %v266
  %593 = vmatpush.msra.mxu0 %v263
  %594 = vmatpush.msra.mxu0 %v260
  %595 = vmatpush.msra.mxu0 %v257
  %596 = vmatpush.msra.mxu0 %v254
  %597 = vmatpush.msra.mxu0 %v251
  %598 = vmatpush.msra.mxu0 %v248
  %599 = vmatpush.msra.mxu0 %v245
  %600 = vmatpush.msra.mxu0 %v242
  %601 = vmatpush.msra.mxu0 %v239
  %602 = vmatpush.msra.mxu0 %v236
  %603 = vmatpush.msra.mxu0 %v233
  %604 = vmatmul.f32.gmra.mxu0 %v524
  %v605 = vpop.f32.mrf.mxu0
  %v606 = vadd.f32 %v284, %v605
  %607 = vdwg.mxu0
  %v608 = vadd.f32 %v132, %v566
  %v609 = vxor.u32 %v608, 2147483648
  %v610 = vmul.f32 %v609, 1.442695
  %v611 = vpow.pop %v610
  %v612 = vadd.f32 %v611, 1.0
  %v613 = vrcp.pop %v612
  %v614 = vmul.f32 %v612, %v613
  %v615 = vsub.f32 1.0, %v614
  %v616 = vmul.f32 %v613, %v615
  %v617 = vadd.f32 %v613, %v616
  %vm618 = vweird.f32 %v612
  %vm619 = vweird.f32 %v613
  %vm620 = vmor %vm618, %vm619
  %v621 = vsel %vm620, %v613, %v617
  %v622 = vand.u32 2147483647, %v612
  %vm623 = vcmp.eq.f32.partialorder %v622, 8.507059e+37
  %v624 = vand.u32 %v612, 2147483648
  %v625 = vor.u32 1.1754944e-38, %v624
  %v626 = vsel %vm623, %v625, %v621
  %v627 = vmul.f32 1.0, %v626
  %v628 = vadd.f32 %v173, %v586
  %v629 = vxor.u32 %v628, 2147483648
  %v630 = vmul.f32 %v629, 1.442695
  %v631 = vpow.pop %v630
  %v632 = vadd.f32 %v631, 1.0
  %v633 = vrcp.pop %v632
  %v634 = vmul.f32 %v632, %v633
  %v635 = vsub.f32 1.0, %v634
  %v636 = vmul.f32 %v633, %v635
  %v637 = vadd.f32 %v633, %v636
  %vm638 = vweird.f32 %v632
  %vm639 = vweird.f32 %v633
  %vm640 = vmor %vm638, %vm639
  %v641 = vsel %vm640, %v633, %v637
  %v642 = vand.u32 2147483647, %v632
  %vm643 = vcmp.eq.f32.partialorder %v642, 8.507059e+37
  %v644 = vand.u32 %v632, 2147483648
  %v645 = vor.u32 1.1754944e-38, %v644
  %v646 = vsel %vm643, %v645, %v641
  %v647 = vmul.f32 1.0, %v646
  %v648 = vmul.f32 %v627, %v606
  %v649 = vadd.f32 %v214, %v648
  %v650 = vtanh.pop %v649
  %v651 = vsub.f32 1.0, %v647
  %v652 = vmul.f32 %v651, %v650
  %v653 = vmul.f32 %v647, %v524
  %v654 = vadd.f32 %v652, %v653
  %v656 = vrot.slane %v654, 1
  %v657 = vrot.slane %v654, 2
  %v658 = vrot.slane %v654, 3
  %v659 = vrot.slane %v654, 4
  %v660 = vrot.slane %v654, 5
  %v661 = vrot.slane %v654, 6
  %v662 = vrot.slane %v654, 7
  %670 = vst [vmem:[#allocation2 + $0x2] sm:$0x1] %v654
  %671 = vst [vmem:[#allocation2 + $0xa] sm:$0x1] %v656
  %672 = vst [vmem:[#allocation2 + $0x12] sm:$0x1] %v657
  %673 = vst [vmem:[#allocation2 + $0x1a] sm:$0x1] %v658
  %674 = vst [vmem:[#allocation2 + $0x22] sm:$0x1] %v659
  %675 = vst [vmem:[#allocation2 + $0x2a] sm:$0x1] %v660
  %676 = vst [vmem:[#allocation2 + $0x32] sm:$0x1] %v661
  %677 = vst [vmem:[#allocation2 + $0x3a] sm:$0x1] %v662
  %678 = vmatpush.msra.mxu0 %v276
  %679 = vmatpush.msra.mxu0 %v273
  %680 = vmatpush.msra.mxu0 %v270
  %681 = vmatpush.msra.mxu0 %v267
  %682 = vmatpush.msra.mxu0 %v264
  %683 = vmatpush.msra.mxu0 %v261
  %684 = vmatpush.msra.mxu0 %v258
  %685 = vmatpush.msra.mxu0 %v255
  %686 = vmatpush.msra.mxu0 %v252
  %687 = vmatpush.msra.mxu0 %v249
  %688 = vmatpush.msra.mxu0 %v246
  %689 = vmatpush.msra.mxu0 %v243
  %690 = vmatpush.msra.mxu0 %v240
  %691 = vmatpush.msra.mxu0 %v237
  %692 = vmatpush.msra.mxu0 %v234
  %693 = vmatpush.msra.mxu0 %v231
  %694 = vmatmul.f32.gmra.mxu0 %v654
  %v695 = vpop.f32.mrf.mxu0
  %v696 = vadd.f32 %v282, %v695
  %697 = vdwg.mxu0
  %698 = vmatpush.msra.mxu0 %v277
  %699 = vmatpush.msra.mxu0 %v274
  %700 = vmatpush.msra.mxu0 %v271
  %701 = vmatpush.msra.mxu0 %v268
  %702 = vmatpush.msra.mxu0 %v265
  %703 = vmatpush.msra.mxu0 %v262
  %704 = vmatpush.msra.mxu0 %v259
  %705 = vmatpush.msra.mxu0 %v256
  %706 = vmatpush.msra.mxu0 %v253
  %707 = vmatpush.msra.mxu0 %v250
  %708 = vmatpush.msra.mxu0 %v247
  %709 = vmatpush.msra.mxu0 %v244
  %710 = vmatpush.msra.mxu0 %v241
  %711 = vmatpush.msra.mxu0 %v238
  %712 = vmatpush.msra.mxu0 %v235
  %713 = vmatpush.msra.mxu0 %v232
  %714 = vmatmul.f32.gmra.mxu0 %v654
  %v715 = vpop.f32.mrf.mxu0
  %v716 = vadd.f32 %v283, %v715
  %717 = vdwg.mxu0
  %718 = vmatpush.msra.mxu0 %v278
  %719 = vmatpush.msra.mxu0 %v275
  %720 = vmatpush.msra.mxu0 %v272
  %721 = vmatpush.msra.mxu0 %v269
  %722 = vmatpush.msra.mxu0 %v266
  %723 = vmatpush.msra.mxu0 %v263
  %724 = vmatpush.msra.mxu0 %v260
  %725 = vmatpush.msra.mxu0 %v257
  %726 = vmatpush.msra.mxu0 %v254
  %727 = vmatpush.msra.mxu0 %v251
  %728 = vmatpush.msra.mxu0 %v248
  %729 = vmatpush.msra.mxu0 %v245
  %730 = vmatpush.msra.mxu0 %v242
  %731 = vmatpush.msra.mxu0 %v239
  %732 = vmatpush.msra.mxu0 %v236
  %733 = vmatpush.msra.mxu0 %v233
  %734 = vmatmul.f32.gmra.mxu0 %v654
  %v735 = vpop.f32.mrf.mxu0
  %v736 = vadd.f32 %v284, %v735
  %737 = vdwg.mxu0
  %v738 = vadd.f32 %v135, %v696
  %v739 = vxor.u32 %v738, 2147483648
  %v740 = vmul.f32 %v739, 1.442695
  %v741 = vpow.pop %v740
  %v742 = vadd.f32 %v741, 1.0
  %v743 = vrcp.pop %v742
  %v744 = vmul.f32 %v742, %v743
  %v745 = vsub.f32 1.0, %v744
  %v746 = vmul.f32 %v743, %v745
  %v747 = vadd.f32 %v743, %v746
  %vm748 = vweird.f32 %v742
  %vm749 = vweird.f32 %v743
  %vm750 = vmor %vm748, %vm749
  %v751 = vsel %vm750, %v743, %v747
  %v752 = vand.u32 2147483647, %v742
  %vm753 = vcmp.eq.f32.partialorder %v752, 8.507059e+37
  %v754 = vand.u32 %v742, 2147483648
  %v755 = vor.u32 1.1754944e-38, %v754
  %v756 = vsel %vm753, %v755, %v751
  %v757 = vmul.f32 1.0, %v756
  %v758 = vadd.f32 %v176, %v716
  %v759 = vxor.u32 %v758, 2147483648
  %v760 = vmul.f32 %v759, 1.442695
  %v761 = vpow.pop %v760
  %v762 = vadd.f32 %v761, 1.0
  %v763 = vrcp.pop %v762
  %v764 = vmul.f32 %v762, %v763
  %v765 = vsub.f32 1.0, %v764
  %v766 = vmul.f32 %v763, %v765
  %v767 = vadd.f32 %v763, %v766
  %vm768 = vweird.f32 %v762
  %vm769 = vweird.f32 %v763
  %vm770 = vmor %vm768, %vm769
  %v771 = vsel %vm770, %v763, %v767
  %v772 = vand.u32 2147483647, %v762
  %vm773 = vcmp.eq.f32.partialorder %v772, 8.507059e+37
  %v774 = vand.u32 %v762, 2147483648
  %v775 = vor.u32 1.1754944e-38, %v774
  %v776 = vsel %vm773, %v775, %v771
  %v777 = vmul.f32 1.0, %v776
  %v778 = vmul.f32 %v757, %v736
  %v779 = vadd.f32 %v217, %v778
  %v780 = vtanh.pop %v779
  %v781 = vsub.f32 1.0, %v777
  %v782 = vmul.f32 %v781, %v780
  %v783 = vmul.f32 %v777, %v654
  %v784 = vadd.f32 %v782, %v783
  %v786 = vrot.slane %v784, 1
  %v787 = vrot.slane %v784, 2
  %v788 = vrot.slane %v784, 3
  %v789 = vrot.slane %v784, 4
  %v790 = vrot.slane %v784, 5
  %v791 = vrot.slane %v784, 6
  %v792 = vrot.slane %v784, 7
  %800 = vst [vmem:[#allocation2 + $0x3] sm:$0x1] %v784
  %801 = vst [vmem:[#allocation2 + $0xb] sm:$0x1] %v786
  %802 = vst [vmem:[#allocation2 + $0x13] sm:$0x1] %v787
  %803 = vst [vmem:[#allocation2 + $0x1b] sm:$0x1] %v788
  %804 = vst [vmem:[#allocation2 + $0x23] sm:$0x1] %v789
  %805 = vst [vmem:[#allocation2 + $0x2b] sm:$0x1] %v790
  %806 = vst [vmem:[#allocation2 + $0x33] sm:$0x1] %v791
  %807 = vst [vmem:[#allocation2 + $0x3b] sm:$0x1] %v792
  %808 = vmatpush.msra.mxu0 %v276
  %809 = vmatpush.msra.mxu0 %v273
  %810 = vmatpush.msra.mxu0 %v270
  %811 = vmatpush.msra.mxu0 %v267
  %812 = vmatpush.msra.mxu0 %v264
  %813 = vmatpush.msra.mxu0 %v261
  %814 = vmatpush.msra.mxu0 %v258
  %815 = vmatpush.msra.mxu0 %v255
  %816 = vmatpush.msra.mxu0 %v252
  %817 = vmatpush.msra.mxu0 %v249
  %818 = vmatpush.msra.mxu0 %v246
  %819 = vmatpush.msra.mxu0 %v243
  %820 = vmatpush.msra.mxu0 %v240
  %821 = vmatpush.msra.mxu0 %v237
  %822 = vmatpush.msra.mxu0 %v234
  %823 = vmatpush.msra.mxu0 %v231
  %824 = vmatmul.f32.gmra.mxu0 %v784
  %v825 = vpop.f32.mrf.mxu0
  %v826 = vadd.f32 %v282, %v825
  %827 = vdwg.mxu0
  %828 = vmatpush.msra.mxu0 %v277
  %829 = vmatpush.msra.mxu0 %v274
  %830 = vmatpush.msra.mxu0 %v271
  %831 = vmatpush.msra.mxu0 %v268
  %832 = vmatpush.msra.mxu0 %v265
  %833 = vmatpush.msra.mxu0 %v262
  %834 = vmatpush.msra.mxu0 %v259
  %835 = vmatpush.msra.mxu0 %v256
  %836 = vmatpush.msra.mxu0 %v253
  %837 = vmatpush.msra.mxu0 %v250
  %838 = vmatpush.msra.mxu0 %v247
  %839 = vmatpush.msra.mxu0 %v244
  %840 = vmatpush.msra.mxu0 %v241
  %841 = vmatpush.msra.mxu0 %v238
  %842 = vmatpush.msra.mxu0 %v235
  %843 = vmatpush.msra.mxu0 %v232
  %844 = vmatmul.f32.gmra.mxu0 %v784
  %v845 = vpop.f32.mrf.mxu0
  %v846 = vadd.f32 %v283, %v845
  %847 = vdwg.mxu0
  %848 = vmatpush.msra.mxu0 %v278
  %849 = vmatpush.msra.mxu0 %v275
  %850 = vmatpush.msra.mxu0 %v272
  %851 = vmatpush.msra.mxu0 %v269
  %852 = vmatpush.msra.mxu0 %v266
  %853 = vmatpush.msra.mxu0 %v263
  %854 = vmatpush.msra.mxu0 %v260
  %855 = vmatpush.msra.mxu0 %v257
  %856 = vmatpush.msra.mxu0 %v254
  %857 = vmatpush.msra.mxu0 %v251
  %858 = vmatpush.msra.mxu0 %v248
  %859 = vmatpush.msra.mxu0 %v245
  %860 = vmatpush.msra.mxu0 %v242
  %861 = vmatpush.msra.mxu0 %v239
  %862 = vmatpush.msra.mxu0 %v236
  %863 = vmatpush.msra.mxu0 %v233
  %864 = vmatmul.f32.gmra.mxu0 %v784
  %v865 = vpop.f32.mrf.mxu0
  %v866 = vadd.f32 %v284, %v865
  %867 = vdwg.mxu0
  %v868 = vadd.f32 %v138, %v826
  %v869 = vxor.u32 %v868, 2147483648
  %v870 = vmul.f32 %v869, 1.442695
  %v871 = vpow.pop %v870
  %v872 = vadd.f32 %v871, 1.0
  %v873 = vrcp.pop %v872
  %v874 = vmul.f32 %v872, %v873
  %v875 = vsub.f32 1.0, %v874
  %v876 = vmul.f32 %v873, %v875
  %v877 = vadd.f32 %v873, %v876
  %vm878 = vweird.f32 %v872
  %vm879 = vweird.f32 %v873
  %vm880 = vmor %vm878, %vm879
  %v881 = vsel %vm880, %v873, %v877
  %v882 = vand.u32 2147483647, %v872
  %vm883 = vcmp.eq.f32.partialorder %v882, 8.507059e+37
  %v884 = vand.u32 %v872, 2147483648
  %v885 = vor.u32 1.1754944e-38, %v884
  %v886 = vsel %vm883, %v885, %v881
  %v887 = vmul.f32 1.0, %v886
  %v888 = vadd.f32 %v179, %v846
  %v889 = vxor.u32 %v888, 2147483648
  %v890 = vmul.f32 %v889, 1.442695
  %v891 = vpow.pop %v890
  %v892 = vadd.f32 %v891, 1.0
  %v893 = vrcp.pop %v892
  %v894 = vmul.f32 %v892, %v893
  %v895 = vsub.f32 1.0, %v894
  %v896 = vmul.f32 %v893, %v895
  %v897 = vadd.f32 %v893, %v896
  %vm898 = vweird.f32 %v892
  %vm899 = vweird.f32 %v893
  %vm900 = vmor %vm898, %vm899
  %v901 = vsel %vm900, %v893, %v897
  %v902 = vand.u32 2147483647, %v892
  %vm903 = vcmp.eq.f32.partialorder %v902, 8.507059e+37
  %v904 = vand.u32 %v892, 2147483648
  %v905 = vor.u32 1.1754944e-38, %v904
  %v906 = vsel %vm903, %v905, %v901
  %v907 = vmul.f32 1.0, %v906
  %v908 = vmul.f32 %v887, %v866
  %v909 = vadd.f32 %v220, %v908
  %v910 = vtanh.pop %v909
  %v911 = vsub.f32 1.0, %v907
  %v912 = vmul.f32 %v911, %v910
  %v913 = vmul.f32 %v907, %v784
  %v914 = vadd.f32 %v912, %v913
  %v916 = vrot.slane %v914, 1
  %v917 = vrot.slane %v914, 2
  %v918 = vrot.slane %v914, 3
  %v919 = vrot.slane %v914, 4
  %v920 = vrot.slane %v914, 5
  %v921 = vrot.slane %v914, 6
  %v922 = vrot.slane %v914, 7
  %930 = vst [vmem:[#allocation2 + $0x4] sm:$0x1] %v914
  %931 = vst [vmem:[#allocation2 + $0xc] sm:$0x1] %v916
  %932 = vst [vmem:[#allocation2 + $0x14] sm:$0x1] %v917
  %933 = vst [vmem:[#allocation2 + $0x1c] sm:$0x1] %v918
  %934 = vst [vmem:[#allocation2 + $0x24] sm:$0x1] %v919
  %935 = vst [vmem:[#allocation2 + $0x2c] sm:$0x1] %v920
  %936 = vst [vmem:[#allocation2 + $0x34] sm:$0x1] %v921
  %937 = vst [vmem:[#allocation2 + $0x3c] sm:$0x1] %v922
  %938 = vmatpush.msra.mxu0 %v276
  %939 = vmatpush.msra.mxu0 %v273
  %940 = vmatpush.msra.mxu0 %v270
  %941 = vmatpush.msra.mxu0 %v267
  %942 = vmatpush.msra.mxu0 %v264
  %943 = vmatpush.msra.mxu0 %v261
  %944 = vmatpush.msra.mxu0 %v258
  %945 = vmatpush.msra.mxu0 %v255
  %946 = vmatpush.msra.mxu0 %v252
  %947 = vmatpush.msra.mxu0 %v249
  %948 = vmatpush.msra.mxu0 %v246
  %949 = vmatpush.msra.mxu0 %v243
  %950 = vmatpush.msra.mxu0 %v240
  %951 = vmatpush.msra.mxu0 %v237
  %952 = vmatpush.msra.mxu0 %v234
  %953 = vmatpush.msra.mxu0 %v231
  %954 = vmatmul.f32.gmra.mxu0 %v914
  %v955 = vpop.f32.mrf.mxu0
  %v956 = vadd.f32 %v282, %v955
  %957 = vdwg.mxu0
  %958 = vmatpush.msra.mxu0 %v277
  %959 = vmatpush.msra.mxu0 %v274
  %960 = vmatpush.msra.mxu0 %v271
  %961 = vmatpush.msra.mxu0 %v268
  %962 = vmatpush.msra.mxu0 %v265
  %963 = vmatpush.msra.mxu0 %v262
  %964 = vmatpush.msra.mxu0 %v259
  %965 = vmatpush.msra.mxu0 %v256
  %966 = vmatpush.msra.mxu0 %v253
  %967 = vmatpush.msra.mxu0 %v250
  %968 = vmatpush.msra.mxu0 %v247
  %969 = vmatpush.msra.mxu0 %v244
  %970 = vmatpush.msra.mxu0 %v241
  %971 = vmatpush.msra.mxu0 %v238
  %972 = vmatpush.msra.mxu0 %v235
  %973 = vmatpush.msra.mxu0 %v232
  %974 = vmatmul.f32.gmra.mxu0 %v914
  %v975 = vpop.f32.mrf.mxu0
  %v976 = vadd.f32 %v283, %v975
  %977 = vdwg.mxu0
  %978 = vmatpush.msra.mxu0 %v278
  %979 = vmatpush.msra.mxu0 %v275
  %980 = vmatpush.msra.mxu0 %v272
  %981 = vmatpush.msra.mxu0 %v269
  %982 = vmatpush.msra.mxu0 %v266
  %983 = vmatpush.msra.mxu0 %v263
  %984 = vmatpush.msra.mxu0 %v260
  %985 = vmatpush.msra.mxu0 %v257
  %986 = vmatpush.msra.mxu0 %v254
  %987 = vmatpush.msra.mxu0 %v251
  %988 = vmatpush.msra.mxu0 %v248
  %989 = vmatpush.msra.mxu0 %v245
  %990 = vmatpush.msra.mxu0 %v242
  %991 = vmatpush.msra.mxu0 %v239
  %992 = vmatpush.msra.mxu0 %v236
  %993 = vmatpush.msra.mxu0 %v233
  %994 = vmatmul.f32.gmra.mxu0 %v914
  %v995 = vpop.f32.mrf.mxu0
  %v996 = vadd.f32 %v284, %v995
  %997 = vdwg.mxu0
  %v998 = vadd.f32 %v141, %v956
  %v999 = vxor.u32 %v998, 2147483648
  %v1000 = vmul.f32 %v999, 1.442695
  %v1001 = vpow.pop %v1000
  %v1002 = vadd.f32 %v1001, 1.0
  %v1003 = vrcp.pop %v1002
  %v1004 = vmul.f32 %v1002, %v1003
  %v1005 = vsub.f32 1.0, %v1004
  %v1006 = vmul.f32 %v1003, %v1005
  %v1007 = vadd.f32 %v1003, %v1006
  %vm1008 = vweird.f32 %v1002
  %vm1009 = vweird.f32 %v1003
  %vm1010 = vmor %vm1008, %vm1009
  %v1011 = vsel %vm1010, %v1003, %v1007
  %v1012 = vand.u32 2147483647, %v1002
  %vm1013 = vcmp.eq.f32.partialorder %v1012, 8.507059e+37
  %v1014 = vand.u32 %v1002, 2147483648
  %v1015 = vor.u32 1.1754944e-38, %v1014
  %v1016 = vsel %vm1013, %v1015, %v1011
  %v1017 = vmul.f32 1.0, %v1016
  %v1018 = vadd.f32 %v182, %v976
  %v1019 = vxor.u32 %v1018, 2147483648
  %v1020 = vmul.f32 %v1019, 1.442695
  %v1021 = vpow.pop %v1020
  %v1022 = vadd.f32 %v1021, 1.0
  %v1023 = vrcp.pop %v1022
  %v1024 = vmul.f32 %v1022, %v1023
  %v1025 = vsub.f32 1.0, %v1024
  %v1026 = vmul.f32 %v1023, %v1025
  %v1027 = vadd.f32 %v1023, %v1026
  %vm1028 = vweird.f32 %v1022
  %vm1029 = vweird.f32 %v1023
  %vm1030 = vmor %vm1028, %vm1029
  %v1031 = vsel %vm1030, %v1023, %v1027
  %v1032 = vand.u32 2147483647, %v1022
  %vm1033 = vcmp.eq.f32.partialorder %v1032, 8.507059e+37
  %v1034 = vand.u32 %v1022, 2147483648
  %v1035 = vor.u32 1.1754944e-38, %v1034
  %v1036 = vsel %vm1033, %v1035, %v1031
  %v1037 = vmul.f32 1.0, %v1036
  %v1038 = vmul.f32 %v1017, %v996
  %v1039 = vadd.f32 %v223, %v1038
  %v1040 = vtanh.pop %v1039
  %v1041 = vsub.f32 1.0, %v1037
  %v1042 = vmul.f32 %v1041, %v1040
  %v1043 = vmul.f32 %v1037, %v914
  %v1044 = vadd.f32 %v1042, %v1043
  %v1046 = vrot.slane %v1044, 1
  %v1047 = vrot.slane %v1044, 2
  %v1048 = vrot.slane %v1044, 3
  %v1049 = vrot.slane %v1044, 4
  %v1050 = vrot.slane %v1044, 5
  %v1051 = vrot.slane %v1044, 6
  %v1052 = vrot.slane %v1044, 7
  %1060 = vst [vmem:[#allocation2 + $0x5] sm:$0x1] %v1044
  %1061 = vst [vmem:[#allocation2 + $0xd] sm:$0x1] %v1046
  %1062 = vst [vmem:[#allocation2 + $0x15] sm:$0x1] %v1047
  %1063 = vst [vmem:[#allocation2 + $0x1d] sm:$0x1] %v1048
  %1064 = vst [vmem:[#allocation2 + $0x25] sm:$0x1] %v1049
  %1065 = vst [vmem:[#allocation2 + $0x2d] sm:$0x1] %v1050
  %1066 = vst [vmem:[#allocation2 + $0x35] sm:$0x1] %v1051
  %1067 = vst [vmem:[#allocation2 + $0x3d] sm:$0x1] %v1052
  %1068 = vmatpush.msra.mxu0 %v276
  %1069 = vmatpush.msra.mxu0 %v273
  %1070 = vmatpush.msra.mxu0 %v270
  %1071 = vmatpush.msra.mxu0 %v267
  %1072 = vmatpush.msra.mxu0 %v264
  %1073 = vmatpush.msra.mxu0 %v261
  %1074 = vmatpush.msra.mxu0 %v258
  %1075 = vmatpush.msra.mxu0 %v255
  %1076 = vmatpush.msra.mxu0 %v252
  %1077 = vmatpush.msra.mxu0 %v249
  %1078 = vmatpush.msra.mxu0 %v246
  %1079 = vmatpush.msra.mxu0 %v243
  %1080 = vmatpush.msra.mxu0 %v240
  %1081 = vmatpush.msra.mxu0 %v237
  %1082 = vmatpush.msra.mxu0 %v234
  %1083 = vmatpush.msra.mxu0 %v231
  %1084 = vmatmul.f32.gmra.mxu0 %v1044
  %v1085 = vpop.f32.mrf.mxu0
  %v1086 = vadd.f32 %v282, %v1085
  %1087 = vdwg.mxu0
  %1088 = vmatpush.msra.mxu0 %v277
  %1089 = vmatpush.msra.mxu0 %v274
  %1090 = vmatpush.msra.mxu0 %v271
  %1091 = vmatpush.msra.mxu0 %v268
  %1092 = vmatpush.msra.mxu0 %v265
  %1093 = vmatpush.msra.mxu0 %v262
  %1094 = vmatpush.msra.mxu0 %v259
  %1095 = vmatpush.msra.mxu0 %v256
  %1096 = vmatpush.msra.mxu0 %v253
  %1097 = vmatpush.msra.mxu0 %v250
  %1098 = vmatpush.msra.mxu0 %v247
  %1099 = vmatpush.msra.mxu0 %v244
  %1100 = vmatpush.msra.mxu0 %v241
  %1101 = vmatpush.msra.mxu0 %v238
  %1102 = vmatpush.msra.mxu0 %v235
  %1103 = vmatpush.msra.mxu0 %v232
  %1104 = vmatmul.f32.gmra.mxu0 %v1044
  %v1105 = vpop.f32.mrf.mxu0
  %v1106 = vadd.f32 %v283, %v1105
  %1107 = vdwg.mxu0
  %1108 = vmatpush.msra.mxu0 %v278
  %1109 = vmatpush.msra.mxu0 %v275
  %1110 = vmatpush.msra.mxu0 %v272
  %1111 = vmatpush.msra.mxu0 %v269
  %1112 = vmatpush.msra.mxu0 %v266
  %1113 = vmatpush.msra.mxu0 %v263
  %1114 = vmatpush.msra.mxu0 %v260
  %1115 = vmatpush.msra.mxu0 %v257
  %1116 = vmatpush.msra.mxu0 %v254
  %1117 = vmatpush.msra.mxu0 %v251
  %1118 = vmatpush.msra.mxu0 %v248
  %1119 = vmatpush.msra.mxu0 %v245
  %1120 = vmatpush.msra.mxu0 %v242
  %1121 = vmatpush.msra.mxu0 %v239
  %1122 = vmatpush.msra.mxu0 %v236
  %1123 = vmatpush.msra.mxu0 %v233
  %1124 = vmatmul.f32.gmra.mxu0 %v1044
  %v1125 = vpop.f32.mrf.mxu0
  %v1126 = vadd.f32 %v284, %v1125
  %1127 = vdwg.mxu0
  %v1128 = vadd.f32 %v144, %v1086
  %v1129 = vxor.u32 %v1128, 2147483648
  %v1130 = vmul.f32 %v1129, 1.442695
  %v1131 = vpow.pop %v1130
  %v1132 = vadd.f32 %v1131, 1.0
  %v1133 = vrcp.pop %v1132
  %v1134 = vmul.f32 %v1132, %v1133
  %v1135 = vsub.f32 1.0, %v1134
  %v1136 = vmul.f32 %v1133, %v1135
  %v1137 = vadd.f32 %v1133, %v1136
  %vm1138 = vweird.f32 %v1132
  %vm1139 = vweird.f32 %v1133
  %vm1140 = vmor %vm1138, %vm1139
  %v1141 = vsel %vm1140, %v1133, %v1137
  %v1142 = vand.u32 2147483647, %v1132
  %vm1143 = vcmp.eq.f32.partialorder %v1142, 8.507059e+37
  %v1144 = vand.u32 %v1132, 2147483648
  %v1145 = vor.u32 1.1754944e-38, %v1144
  %v1146 = vsel %vm1143, %v1145, %v1141
  %v1147 = vmul.f32 1.0, %v1146
  %v1148 = vadd.f32 %v185, %v1106
  %v1149 = vxor.u32 %v1148, 2147483648
  %v1150 = vmul.f32 %v1149, 1.442695
  %v1151 = vpow.pop %v1150
  %v1152 = vadd.f32 %v1151, 1.0
  %v1153 = vrcp.pop %v1152
  %v1154 = vmul.f32 %v1152, %v1153
  %v1155 = vsub.f32 1.0, %v1154
  %v1156 = vmul.f32 %v1153, %v1155
  %v1157 = vadd.f32 %v1153, %v1156
  %vm1158 = vweird.f32 %v1152
  %vm1159 = vweird.f32 %v1153
  %vm1160 = vmor %vm1158, %vm1159
  %v1161 = vsel %vm1160, %v1153, %v1157
  %v1162 = vand.u32 2147483647, %v1152
  %vm1163 = vcmp.eq.f32.partialorder %v1162, 8.507059e+37
  %v1164 = vand.u32 %v1152, 2147483648
  %v1165 = vor.u32 1.1754944e-38, %v1164
  %v1166 = vsel %vm1163, %v1165, %v1161
  %v1167 = vmul.f32 1.0, %v1166
  %v1168 = vmul.f32 %v1147, %v1126
  %v1169 = vadd.f32 %v226, %v1168
  %v1170 = vtanh.pop %v1169
  %v1171 = vsub.f32 1.0, %v1167
  %v1172 = vmul.f32 %v1171, %v1170
  %v1173 = vmul.f32 %v1167, %v1044
  %v1174 = vadd.f32 %v1172, %v1173
  %v1176 = vrot.slane %v1174, 1
  %v1177 = vrot.slane %v1174, 2
  %v1178 = vrot.slane %v1174, 3
  %v1179 = vrot.slane %v1174, 4
  %v1180 = vrot.slane %v1174, 5
  %v1181 = vrot.slane %v1174, 6
  %v1182 = vrot.slane %v1174, 7
  %1190 = vst [vmem:[#allocation2 + $0x6] sm:$0x1] %v1174
  %1191 = vst [vmem:[#allocation2 + $0xe] sm:$0x1] %v1176
  %1192 = vst [vmem:[#allocation2 + $0x16] sm:$0x1] %v1177
  %1193 = vst [vmem:[#allocation2 + $0x1e] sm:$0x1] %v1178
  %1194 = vst [vmem:[#allocation2 + $0x26] sm:$0x1] %v1179
  %1195 = vst [vmem:[#allocation2 + $0x2e] sm:$0x1] %v1180
  %1196 = vst [vmem:[#allocation2 + $0x36] sm:$0x1] %v1181
  %1197 = vst [vmem:[#allocation2 + $0x3e] sm:$0x1] %v1182
  %1198 = vmatpush.msra.mxu0 %v276
  %1199 = vmatpush.msra.mxu0 %v273
  %1200 = vmatpush.msra.mxu0 %v270
  %1201 = vmatpush.msra.mxu0 %v267
  %1202 = vmatpush.msra.mxu0 %v264
  %1203 = vmatpush.msra.mxu0 %v261
  %1204 = vmatpush.msra.mxu0 %v258
  %1205 = vmatpush.msra.mxu0 %v255
  %1206 = vmatpush.msra.mxu0 %v252
  %1207 = vmatpush.msra.mxu0 %v249
  %1208 = vmatpush.msra.mxu0 %v246
  %1209 = vmatpush.msra.mxu0 %v243
  %1210 = vmatpush.msra.mxu0 %v240
  %1211 = vmatpush.msra.mxu0 %v237
  %1212 = vmatpush.msra.mxu0 %v234
  %1213 = vmatpush.msra.mxu0 %v231
  %1214 = vmatmul.f32.gmra.mxu0 %v1174
  %v1215 = vpop.f32.mrf.mxu0
  %v1216 = vadd.f32 %v282, %v1215
  %1217 = vdwg.mxu0
  %1218 = vmatpush.msra.mxu0 %v277
  %1219 = vmatpush.msra.mxu0 %v274
  %1220 = vmatpush.msra.mxu0 %v271
  %1221 = vmatpush.msra.mxu0 %v268
  %1222 = vmatpush.msra.mxu0 %v265
  %1223 = vmatpush.msra.mxu0 %v262
  %1224 = vmatpush.msra.mxu0 %v259
  %1225 = vmatpush.msra.mxu0 %v256
  %1226 = vmatpush.msra.mxu0 %v253
  %1227 = vmatpush.msra.mxu0 %v250
  %1228 = vmatpush.msra.mxu0 %v247
  %1229 = vmatpush.msra.mxu0 %v244
  %1230 = vmatpush.msra.mxu0 %v241
  %1231 = vmatpush.msra.mxu0 %v238
  %1232 = vmatpush.msra.mxu0 %v235
  %1233 = vmatpush.msra.mxu0 %v232
  %1234 = vmatmul.f32.gmra.mxu0 %v1174
  %v1235 = vpop.f32.mrf.mxu0
  %v1236 = vadd.f32 %v283, %v1235
  %1237 = vdwg.mxu0
  %1238 = vmatpush.msra.mxu0 %v278
  %1239 = vmatpush.msra.mxu0 %v275
  %1240 = vmatpush.msra.mxu0 %v272
  %1241 = vmatpush.msra.mxu0 %v269
  %1242 = vmatpush.msra.mxu0 %v266
  %1243 = vmatpush.msra.mxu0 %v263
  %1244 = vmatpush.msra.mxu0 %v260
  %1245 = vmatpush.msra.mxu0 %v257
  %1246 = vmatpush.msra.mxu0 %v254
  %1247 = vmatpush.msra.mxu0 %v251
  %1248 = vmatpush.msra.mxu0 %v248
  %1249 = vmatpush.msra.mxu0 %v245
  %1250 = vmatpush.msra.mxu0 %v242
  %1251 = vmatpush.msra.mxu0 %v239
  %1252 = vmatpush.msra.mxu0 %v236
  %1253 = vmatpush.msra.mxu0 %v233
  %1254 = vmatmul.f32.gmra.mxu0 %v1174
  %v1255 = vpop.f32.mrf.mxu0
  %v1256 = vadd.f32 %v284, %v1255
  %1257 = vdwg.mxu0
  %v1258 = vadd.f32 %v147, %v1216
  %v1259 = vxor.u32 %v1258, 2147483648
  %v1260 = vmul.f32 %v1259, 1.442695
  %v1261 = vpow.pop %v1260
  %v1262 = vadd.f32 %v1261, 1.0
  %v1263 = vrcp.pop %v1262
  %v1264 = vmul.f32 %v1262, %v1263
  %v1265 = vsub.f32 1.0, %v1264
  %v1266 = vmul.f32 %v1263, %v1265
  %v1267 = vadd.f32 %v1263, %v1266
  %vm1268 = vweird.f32 %v1262
  %vm1269 = vweird.f32 %v1263
  %vm1270 = vmor %vm1268, %vm1269
  %v1271 = vsel %vm1270, %v1263, %v1267
  %v1272 = vand.u32 2147483647, %v1262
  %vm1273 = vcmp.eq.f32.partialorder %v1272, 8.507059e+37
  %v1274 = vand.u32 %v1262, 2147483648
  %v1275 = vor.u32 1.1754944e-38, %v1274
  %v1276 = vsel %vm1273, %v1275, %v1271
  %v1277 = vmul.f32 1.0, %v1276
  %v1278 = vadd.f32 %v188, %v1236
  %v1279 = vxor.u32 %v1278, 2147483648
  %v1280 = vmul.f32 %v1279, 1.442695
  %v1281 = vpow.pop %v1280
  %v1282 = vadd.f32 %v1281, 1.0
  %v1283 = vrcp.pop %v1282
  %v1284 = vmul.f32 %v1282, %v1283
  %v1285 = vsub.f32 1.0, %v1284
  %v1286 = vmul.f32 %v1283, %v1285
  %v1287 = vadd.f32 %v1283, %v1286
  %vm1288 = vweird.f32 %v1282
  %vm1289 = vweird.f32 %v1283
  %vm1290 = vmor %vm1288, %vm1289
  %v1291 = vsel %vm1290, %v1283, %v1287
  %v1292 = vand.u32 2147483647, %v1282
  %vm1293 = vcmp.eq.f32.partialorder %v1292, 8.507059e+37
  %v1294 = vand.u32 %v1282, 2147483648
  %v1295 = vor.u32 1.1754944e-38, %v1294
  %v1296 = vsel %vm1293, %v1295, %v1291
  %v1297 = vmul.f32 1.0, %v1296
  %v1298 = vmul.f32 %v1277, %v1256
  %v1299 = vadd.f32 %v229, %v1298
  %v1300 = vtanh.pop %v1299
  %v1301 = vsub.f32 1.0, %v1297
  %v1302 = vmul.f32 %v1301, %v1300
  %v1303 = vmul.f32 %v1297, %v1174
  %v1304 = vadd.f32 %v1302, %v1303
  %v1306 = vrot.slane %v1304, 1
  %v1307 = vrot.slane %v1304, 2
  %v1308 = vrot.slane %v1304, 3
  %v1309 = vrot.slane %v1304, 4
  %v1310 = vrot.slane %v1304, 5
  %v1311 = vrot.slane %v1304, 6
  %v1312 = vrot.slane %v1304, 7
  %1320 = vst [vmem:[#allocation2 + $0x7] sm:$0x1] %v1304
  %1321 = vst [vmem:[#allocation2 + $0xf] sm:$0x1] %v1306
  %1322 = vst [vmem:[#allocation2 + $0x17] sm:$0x1] %v1307
  %1323 = vst [vmem:[#allocation2 + $0x1f] sm:$0x1] %v1308
  %1324 = vst [vmem:[#allocation2 + $0x27] sm:$0x1] %v1309
  %1325 = vst [vmem:[#allocation2 + $0x2f] sm:$0x1] %v1310
  %1326 = vst [vmem:[#allocation2 + $0x37] sm:$0x1] %v1311
  %1327 = vst [vmem:[#allocation2 + $0x3f] sm:$0x1] %v1312
  %v1328 = vld [vmem:[#allocation2] sm:$0xff]
  %v1329 = vld [vmem:[#allocation2 + $0x8] sm:$0xff]
  %v1330 = vld [vmem:[#allocation2 + $0x10] sm:$0xff]
  %v1331 = vld [vmem:[#allocation2 + $0x18] sm:$0xff]
  %v1332 = vld [vmem:[#allocation2 + $0x20] sm:$0xff]
  %v1333 = vld [vmem:[#allocation2 + $0x28] sm:$0xff]
  %v1334 = vld [vmem:[#allocation2 + $0x30] sm:$0xff]
  %v1335 = vld [vmem:[#allocation2 + $0x38] sm:$0xff]
  %v1336 = vld [vmem:[%s1] sm:$0xff]
  %v1337 = vld [vmem:[%s1 + $0x8] sm:$0xff]
  %v1338 = vld [vmem:[%s1 + $0x10] sm:$0xff]
  %v1339 = vld [vmem:[%s1 + $0x18] sm:$0xff]
  %v1340 = vld [vmem:[%s1 + $0x20] sm:$0xff]
  %v1341 = vld [vmem:[%s1 + $0x28] sm:$0xff]
  %v1342 = vld [vmem:[%s1 + $0x30] sm:$0xff]
  %v1343 = vld [vmem:[%s1 + $0x38] sm:$0xff]
  %v1344 = vld [vmem:[%s1 + $0x40] sm:$0xff]
  %v1345 = vld [vmem:[%s1 + $0x48] sm:$0xff]
  %v1346 = vld [vmem:[%s1 + $0x50] sm:$0xff]
  %v1347 = vld [vmem:[%s1 + $0x58] sm:$0xff]
  %v1348 = vld [vmem:[%s1 + $0x60] sm:$0xff]
  %v1349 = vld [vmem:[%s1 + $0x68] sm:$0xff]
  %v1350 = vld [vmem:[%s1 + $0x70] sm:$0xff]
  %v1351 = vld [vmem:[%s1 + $0x78] sm:$0xff]
  %v1352 = vld [vmem:[%s1 + $0x80] sm:$0xff]
  %v1353 = vld [vmem:[%s1 + $0x88] sm:$0xff]
  %v1354 = vld [vmem:[%s1 + $0x90] sm:$0xff]
  %v1355 = vld [vmem:[%s1 + $0x98] sm:$0xff]
  %v1356 = vld [vmem:[%s1 + $0xa0] sm:$0xff]
  %v1357 = vld [vmem:[%s1 + $0xa8] sm:$0xff]
  %v1358 = vld [vmem:[%s1 + $0xb0] sm:$0xff]
  %v1359 = vld [vmem:[%s1 + $0xb8] sm:$0xff]
  %v1360 = vld [vmem:[%s1 + $0xc0] sm:$0xff]
  %v1361 = vld [vmem:[%s1 + $0xc8] sm:$0xff]
  %v1362 = vld [vmem:[%s1 + $0xd0] sm:$0xff]
  %v1363 = vld [vmem:[%s1 + $0xd8] sm:$0xff]
  %v1364 = vld [vmem:[%s1 + $0xe0] sm:$0xff]
  %v1365 = vld [vmem:[%s1 + $0xe8] sm:$0xff]
  %v1366 = vld [vmem:[%s1 + $0xf0] sm:$0xff]
  %v1367 = vld [vmem:[%s1 + $0xf8] sm:$0xff]
  %v1368 = vld [vmem:[%s1 + $0x100] sm:$0xff]
  %v1369 = vld [vmem:[%s1 + $0x108] sm:$0xff]
  %v1370 = vld [vmem:[%s1 + $0x110] sm:$0xff]
  %v1371 = vld [vmem:[%s1 + $0x118] sm:$0xff]
  %v1372 = vld [vmem:[%s1 + $0x120] sm:$0xff]
  %v1373 = vld [vmem:[%s1 + $0x128] sm:$0xff]
  %v1374 = vld [vmem:[%s1 + $0x130] sm:$0xff]
  %v1375 = vld [vmem:[%s1 + $0x138] sm:$0xff]
  %v1376 = vld [vmem:[%s1 + $0x140] sm:$0xff]
  %v1377 = vld [vmem:[%s1 + $0x148] sm:$0xff]
  %v1378 = vld [vmem:[%s1 + $0x150] sm:$0xff]
  %v1379 = vld [vmem:[%s1 + $0x158] sm:$0xff]
  %v1380 = vld [vmem:[%s1 + $0x160] sm:$0xff]
  %v1381 = vld [vmem:[%s1 + $0x168] sm:$0xff]
  %v1382 = vld [vmem:[%s1 + $0x170] sm:$0xff]
  %v1383 = vld [vmem:[%s1 + $0x178] sm:$0xff]
  %v1384 = vld [vmem:[%s1 + $0x180] sm:$0xff]
  %v1385 = vld [vmem:[%s1 + $0x188] sm:$0xff]
  %v1386 = vld [vmem:[%s1 + $0x190] sm:$0xff]
  %v1387 = vld [vmem:[%s1 + $0x198] sm:$0xff]
  %v1388 = vld [vmem:[%s1 + $0x1a0] sm:$0xff]
  %v1389 = vld [vmem:[%s1 + $0x1a8] sm:$0xff]
  %v1390 = vld [vmem:[%s1 + $0x1b0] sm:$0xff]
  %v1391 = vld [vmem:[%s1 + $0x1b8] sm:$0xff]
  %v1392 = vld [vmem:[%s1 + $0x1c0] sm:$0xff]
  %v1393 = vld [vmem:[%s1 + $0x1c8] sm:$0xff]
  %v1394 = vld [vmem:[%s1 + $0x1d0] sm:$0xff]
  %v1395 = vld [vmem:[%s1 + $0x1d8] sm:$0xff]
  %v1396 = vld [vmem:[%s1 + $0x1e0] sm:$0xff]
  %v1397 = vld [vmem:[%s1 + $0x1e8] sm:$0xff]
  %v1398 = vld [vmem:[%s1 + $0x1f0] sm:$0xff]
  %v1399 = vld [vmem:[%s1 + $0x1f8] sm:$0xff]
  %v1400 = vld [vmem:[%s1 + $0x200] sm:$0xff]
  %v1401 = vld [vmem:[%s1 + $0x208] sm:$0xff]
  %v1402 = vld [vmem:[%s1 + $0x210] sm:$0xff]
  %v1403 = vld [vmem:[%s1 + $0x218] sm:$0xff]
  %v1404 = vld [vmem:[%s1 + $0x220] sm:$0xff]
  %v1405 = vld [vmem:[%s1 + $0x228] sm:$0xff]
  %v1406 = vld [vmem:[%s1 + $0x230] sm:$0xff]
  %v1407 = vld [vmem:[%s1 + $0x238] sm:$0xff]
  %v1408 = vld [vmem:[%s1 + $0x240] sm:$0xff]
  %v1409 = vld [vmem:[%s1 + $0x248] sm:$0xff]
  %v1410 = vld [vmem:[%s1 + $0x250] sm:$0xff]
  %v1411 = vld [vmem:[%s1 + $0x258] sm:$0xff]
  %v1412 = vld [vmem:[%s1 + $0x260] sm:$0xff]
  %v1413 = vld [vmem:[%s1 + $0x268] sm:$0xff]
  %v1414 = vld [vmem:[%s1 + $0x270] sm:$0xff]
  %v1415 = vld [vmem:[%s1 + $0x278] sm:$0xff]
  %v1416 = vld [vmem:[%s1 + $0x280] sm:$0xff]
  %v1417 = vld [vmem:[%s1 + $0x288] sm:$0xff]
  %v1418 = vld [vmem:[%s1 + $0x290] sm:$0xff]
  %v1419 = vld [vmem:[%s1 + $0x298] sm:$0xff]
  %v1420 = vld [vmem:[%s1 + $0x2a0] sm:$0xff]
  %v1421 = vld [vmem:[%s1 + $0x2a8] sm:$0xff]
  %v1422 = vld [vmem:[%s1 + $0x2b0] sm:$0xff]
  %v1423 = vld [vmem:[%s1 + $0x2b8] sm:$0xff]
  %v1424 = vld [vmem:[%s1 + $0x2c0] sm:$0xff]
  %v1425 = vld [vmem:[%s1 + $0x2c8] sm:$0xff]
  %v1426 = vld [vmem:[%s1 + $0x2d0] sm:$0xff]
  %v1427 = vld [vmem:[%s1 + $0x2d8] sm:$0xff]
  %v1428 = vld [vmem:[%s1 + $0x2e0] sm:$0xff]
  %v1429 = vld [vmem:[%s1 + $0x2e8] sm:$0xff]
  %v1430 = vld [vmem:[%s1 + $0x2f0] sm:$0xff]
  %v1431 = vld [vmem:[%s1 + $0x2f8] sm:$0xff]
  %v1432 = vld [vmem:[%s1 + $0x300] sm:$0xff]
  %v1433 = vld [vmem:[%s1 + $0x308] sm:$0xff]
  %v1434 = vld [vmem:[%s1 + $0x310] sm:$0xff]
  %v1435 = vld [vmem:[%s1 + $0x318] sm:$0xff]
  %v1436 = vld [vmem:[%s1 + $0x320] sm:$0xff]
  %v1437 = vld [vmem:[%s1 + $0x328] sm:$0xff]
  %v1438 = vld [vmem:[%s1 + $0x330] sm:$0xff]
  %v1439 = vld [vmem:[%s1 + $0x338] sm:$0xff]
  %v1440 = vld [vmem:[%s1 + $0x340] sm:$0xff]
  %v1441 = vld [vmem:[%s1 + $0x348] sm:$0xff]
  %v1442 = vld [vmem:[%s1 + $0x350] sm:$0xff]
  %v1443 = vld [vmem:[%s1 + $0x358] sm:$0xff]
  %v1444 = vld [vmem:[%s1 + $0x360] sm:$0xff]
  %v1445 = vld [vmem:[%s1 + $0x368] sm:$0xff]
  %v1446 = vld [vmem:[%s1 + $0x370] sm:$0xff]
  %v1447 = vld [vmem:[%s1 + $0x378] sm:$0xff]
  %v1448 = vld [vmem:[%s1 + $0x380] sm:$0xff]
  %v1449 = vld [vmem:[%s1 + $0x388] sm:$0xff]
  %v1450 = vld [vmem:[%s1 + $0x390] sm:$0xff]
  %v1451 = vld [vmem:[%s1 + $0x398] sm:$0xff]
  %v1452 = vld [vmem:[%s1 + $0x3a0] sm:$0xff]
  %v1453 = vld [vmem:[%s1 + $0x3a8] sm:$0xff]
  %v1454 = vld [vmem:[%s1 + $0x3b0] sm:$0xff]
  %v1455 = vld [vmem:[%s1 + $0x3b8] sm:$0xff]
  %v1456 = vld [vmem:[%s1 + $0x3c0] sm:$0xff]
  %v1457 = vld [vmem:[%s1 + $0x3c8] sm:$0xff]
  %v1458 = vld [vmem:[%s1 + $0x3d0] sm:$0xff]
  %v1459 = vld [vmem:[%s1 + $0x3d8] sm:$0xff]
  %v1460 = vld [vmem:[%s1 + $0x3e0] sm:$0xff]
  %v1461 = vld [vmem:[%s1 + $0x3e8] sm:$0xff]
  %v1462 = vld [vmem:[%s1 + $0x3f0] sm:$0xff]
  %v1463 = vld [vmem:[%s1 + $0x3f8] sm:$0xff]
  %v1464 = vld [vmem:[%s3] sm:$0x1]
  %v1466 = vperm.slane %v1464, 0
  %1468 = vmatpush.xpose.msra.mxu0 %v1351
  %1469 = vmatpush.xpose.msra.mxu0 %v1350
  %1470 = vmatpush.xpose.msra.mxu0 %v1349
  %1471 = vmatpush.xpose.msra.mxu0 %v1348
  %1472 = vmatpush.xpose.msra.mxu0 %v1347
  %1473 = vmatpush.xpose.msra.mxu0 %v1346
  %1474 = vmatpush.xpose.msra.mxu0 %v1345
  %1475 = vmatpush.xpose.msra.mxu0 %v1344
  %1476 = vmatpush.xpose.msra.mxu0 %v1343
  %1477 = vmatpush.xpose.msra.mxu0 %v1342
  %1478 = vmatpush.xpose.msra.mxu0 %v1341
  %1479 = vmatpush.xpose.msra.mxu0 %v1340
  %1480 = vmatpush.xpose.msra.mxu0 %v1339
  %1481 = vmatpush.xpose.msra.mxu0 %v1338
  %1482 = vmatpush.xpose.msra.mxu0 %v1337
  %1483 = vmatpush.xpose.msra.mxu0 %v1336
  %1484 = vmatmul.f32.gmra.mxu0 %v1328
  %v1485 = vpop.f32.mrf.mxu0
  %v1486 = vadd.f32 %v1466, %v1485
  %1487 = vdwg.mxu0
  %1488 = vmatpush.xpose.msra.mxu0 %v1367
  %1489 = vmatpush.xpose.msra.mxu0 %v1366
  %1490 = vmatpush.xpose.msra.mxu0 %v1365
  %1491 = vmatpush.xpose.msra.mxu0 %v1364
  %1492 = vmatpush.xpose.msra.mxu0 %v1363
  %1493 = vmatpush.xpose.msra.mxu0 %v1362
  %1494 = vmatpush.xpose.msra.mxu0 %v1361
  %1495 = vmatpush.xpose.msra.mxu0 %v1360
  %1496 = vmatpush.xpose.msra.mxu0 %v1359
  %1497 = vmatpush.xpose.msra.mxu0 %v1358
  %1498 = vmatpush.xpose.msra.mxu0 %v1357
  %1499 = vmatpush.xpose.msra.mxu0 %v1356
  %1500 = vmatpush.xpose.msra.mxu0 %v1355
  %1501 = vmatpush.xpose.msra.mxu0 %v1354
  %1502 = vmatpush.xpose.msra.mxu0 %v1353
  %1503 = vmatpush.xpose.msra.mxu0 %v1352
  %1504 = vmatmul.f32.gmra.mxu0 %v1329
  %v1505 = vpop.f32.mrf.mxu0
  %v1506 = vadd.f32 %v1466, %v1505
  %1507 = vdwg.mxu0
  %1508 = vmatpush.xpose.msra.mxu0 %v1383
  %1509 = vmatpush.xpose.msra.mxu0 %v1382
  %1510 = vmatpush.xpose.msra.mxu0 %v1381
  %1511 = vmatpush.xpose.msra.mxu0 %v1380
  %1512 = vmatpush.xpose.msra.mxu0 %v1379
  %1513 = vmatpush.xpose.msra.mxu0 %v1378
  %1514 = vmatpush.xpose.msra.mxu0 %v1377
  %1515 = vmatpush.xpose.msra.mxu0 %v1376
  %1516 = vmatpush.xpose.msra.mxu0 %v1375
  %1517 = vmatpush.xpose.msra.mxu0 %v1374
  %1518 = vmatpush.xpose.msra.mxu0 %v1373
  %1519 = vmatpush.xpose.msra.mxu0 %v1372
  %1520 = vmatpush.xpose.msra.mxu0 %v1371
  %1521 = vmatpush.xpose.msra.mxu0 %v1370
  %1522 = vmatpush.xpose.msra.mxu0 %v1369
  %1523 = vmatpush.xpose.msra.mxu0 %v1368
  %1524 = vmatmul.f32.gmra.mxu0 %v1330
  %v1525 = vpop.f32.mrf.mxu0
  %v1526 = vadd.f32 %v1466, %v1525
  %1527 = vdwg.mxu0
  %1528 = vmatpush.xpose.msra.mxu0 %v1399
  %1529 = vmatpush.xpose.msra.mxu0 %v1398
  %1530 = vmatpush.xpose.msra.mxu0 %v1397
  %1531 = vmatpush.xpose.msra.mxu0 %v1396
  %1532 = vmatpush.xpose.msra.mxu0 %v1395
  %1533 = vmatpush.xpose.msra.mxu0 %v1394
  %1534 = vmatpush.xpose.msra.mxu0 %v1393
  %1535 = vmatpush.xpose.msra.mxu0 %v1392
  %1536 = vmatpush.xpose.msra.mxu0 %v1391
  %1537 = vmatpush.xpose.msra.mxu0 %v1390
  %1538 = vmatpush.xpose.msra.mxu0 %v1389
  %1539 = vmatpush.xpose.msra.mxu0 %v1388
  %1540 = vmatpush.xpose.msra.mxu0 %v1387
  %1541 = vmatpush.xpose.msra.mxu0 %v1386
  %1542 = vmatpush.xpose.msra.mxu0 %v1385
  %1543 = vmatpush.xpose.msra.mxu0 %v1384
  %1544 = vmatmul.f32.gmra.mxu0 %v1331
  %v1545 = vpop.f32.mrf.mxu0
  %v1546 = vadd.f32 %v1466, %v1545
  %1547 = vdwg.mxu0
  %1548 = vmatpush.xpose.msra.mxu0 %v1415
  %1549 = vmatpush.xpose.msra.mxu0 %v1414
  %1550 = vmatpush.xpose.msra.mxu0 %v1413
  %1551 = vmatpush.xpose.msra.mxu0 %v1412
  %1552 = vmatpush.xpose.msra.mxu0 %v1411
  %1553 = vmatpush.xpose.msra.mxu0 %v1410
  %1554 = vmatpush.xpose.msra.mxu0 %v1409
  %1555 = vmatpush.xpose.msra.mxu0 %v1408
  %1556 = vmatpush.xpose.msra.mxu0 %v1407
  %1557 = vmatpush.xpose.msra.mxu0 %v1406
  %1558 = vmatpush.xpose.msra.mxu0 %v1405
  %1559 = vmatpush.xpose.msra.mxu0 %v1404
  %1560 = vmatpush.xpose.msra.mxu0 %v1403
  %1561 = vmatpush.xpose.msra.mxu0 %v1402
  %1562 = vmatpush.xpose.msra.mxu0 %v1401
  %1563 = vmatpush.xpose.msra.mxu0 %v1400
  %1564 = vmatmul.f32.gmra.mxu0 %v1332
  %v1565 = vpop.f32.mrf.mxu0
  %v1566 = vadd.f32 %v1466, %v1565
  %1567 = vdwg.mxu0
  %1568 = vmatpush.xpose.msra.mxu0 %v1431
  %1569 = vmatpush.xpose.msra.mxu0 %v1430
  %1570 = vmatpush.xpose.msra.mxu0 %v1429
  %1571 = vmatpush.xpose.msra.mxu0 %v1428
  %1572 = vmatpush.xpose.msra.mxu0 %v1427
  %1573 = vmatpush.xpose.msra.mxu0 %v1426
  %1574 = vmatpush.xpose.msra.mxu0 %v1425
  %1575 = vmatpush.xpose.msra.mxu0 %v1424
  %1576 = vmatpush.xpose.msra.mxu0 %v1423
  %1577 = vmatpush.xpose.msra.mxu0 %v1422
  %1578 = vmatpush.xpose.msra.mxu0 %v1421
  %1579 = vmatpush.xpose.msra.mxu0 %v1420
  %1580 = vmatpush.xpose.msra.mxu0 %v1419
  %1581 = vmatpush.xpose.msra.mxu0 %v1418
  %1582 = vmatpush.xpose.msra.mxu0 %v1417
  %1583 = vmatpush.xpose.msra.mxu0 %v1416
  %1584 = vmatmul.f32.gmra.mxu0 %v1333
  %v1585 = vpop.f32.mrf.mxu0
  %v1586 = vadd.f32 %v1466, %v1585
  %1587 = vdwg.mxu0
  %1588 = vmatpush.xpose.msra.mxu0 %v1447
  %1589 = vmatpush.xpose.msra.mxu0 %v1446
  %1590 = vmatpush.xpose.msra.mxu0 %v1445
  %1591 = vmatpush.xpose.msra.mxu0 %v1444
  %1592 = vmatpush.xpose.msra.mxu0 %v1443
  %1593 = vmatpush.xpose.msra.mxu0 %v1442
  %1594 = vmatpush.xpose.msra.mxu0 %v1441
  %1595 = vmatpush.xpose.msra.mxu0 %v1440
  %1596 = vmatpush.xpose.msra.mxu0 %v1439
  %1597 = vmatpush.xpose.msra.mxu0 %v1438
  %1598 = vmatpush.xpose.msra.mxu0 %v1437
  %1599 = vmatpush.xpose.msra.mxu0 %v1436
  %1600 = vmatpush.xpose.msra.mxu0 %v1435
  %1601 = vmatpush.xpose.msra.mxu0 %v1434
  %1602 = vmatpush.xpose.msra.mxu0 %v1433
  %1603 = vmatpush.xpose.msra.mxu0 %v1432
  %1604 = vmatmul.f32.gmra.mxu0 %v1334
  %v1605 = vpop.f32.mrf.mxu0
  %v1606 = vadd.f32 %v1466, %v1605
  %1607 = vdwg.mxu0
  %1608 = vmatpush.xpose.msra.mxu0 %v1463
  %1609 = vmatpush.xpose.msra.mxu0 %v1462
  %1610 = vmatpush.xpose.msra.mxu0 %v1461
  %1611 = vmatpush.xpose.msra.mxu0 %v1460
  %1612 = vmatpush.xpose.msra.mxu0 %v1459
  %1613 = vmatpush.xpose.msra.mxu0 %v1458
  %1614 = vmatpush.xpose.msra.mxu0 %v1457
  %1615 = vmatpush.xpose.msra.mxu0 %v1456
  %1616 = vmatpush.xpose.msra.mxu0 %v1455
  %1617 = vmatpush.xpose.msra.mxu0 %v1454
  %1618 = vmatpush.xpose.msra.mxu0 %v1453
  %1619 = vmatpush.xpose.msra.mxu0 %v1452
  %1620 = vmatpush.xpose.msra.mxu0 %v1451
  %1621 = vmatpush.xpose.msra.mxu0 %v1450
  %1622 = vmatpush.xpose.msra.mxu0 %v1449
  %1623 = vmatpush.xpose.msra.mxu0 %v1448
  %1624 = vmatmul.f32.gmra.mxu0 %v1335
  %v1625 = vpop.f32.mrf.mxu0
  %v1626 = vadd.f32 %v1466, %v1625
  %1627 = vdwg.mxu0
  %1628 = vmax.xlane.f32.xlu0 %v1486
  %v1629 = vpop.xlane.xlu0 %1628
  %1630 = vmax.xlane.f32.xlu0 %v1506
  %v1631 = vpop.xlane.xlu0 %1630
  %1632 = vmax.xlane.f32.xlu0 %v1526
  %v1633 = vpop.xlane.xlu0 %1632
  %1634 = vmax.xlane.f32.xlu0 %v1546
  %v1635 = vpop.xlane.xlu0 %1634
  %1636 = vmax.xlane.f32.xlu0 %v1566
  %v1637 = vpop.xlane.xlu0 %1636
  %1638 = vmax.xlane.f32.xlu0 %v1586
  %v1639 = vpop.xlane.xlu0 %1638
  %1640 = vmax.xlane.f32.xlu0 %v1606
  %v1641 = vpop.xlane.xlu0 %1640
  %1642 = vmax.xlane.f32.xlu0 %v1626
  %v1643 = vpop.xlane.xlu0 %1642
  %v1644 = vsub.f32 %v1486, %v1629
  %v1645 = vsub.f32 %v1506, %v1631
  %v1646 = vsub.f32 %v1526, %v1633
  %v1647 = vsub.f32 %v1546, %v1635
  %v1648 = vsub.f32 %v1566, %v1637
  %v1649 = vsub.f32 %v1586, %v1639
  %v1650 = vsub.f32 %v1606, %v1641
  %v1651 = vsub.f32 %v1626, %v1643
  %v1652 = vmul.f32 %v1644, 1.442695
  %v1653 = vpow.pop %v1652
  %v1654 = vmul.f32 %v1645, 1.442695
  %v1655 = vpow.pop %v1654
  %v1656 = vmul.f32 %v1646, 1.442695
  %v1657 = vpow.pop %v1656
  %v1658 = vmul.f32 %v1647, 1.442695
  %v1659 = vpow.pop %v1658
  %v1660 = vmul.f32 %v1648, 1.442695
  %v1661 = vpow.pop %v1660
  %v1662 = vmul.f32 %v1649, 1.442695
  %v1663 = vpow.pop %v1662
  %v1664 = vmul.f32 %v1650, 1.442695
  %v1665 = vpow.pop %v1664
  %v1666 = vmul.f32 %v1651, 1.442695
  %v1667 = vpow.pop %v1666
  %1668 = vadd.xlane.f32.xlu0 %v1653
  %v1669 = vpop.xlane.xlu0 %1668
  %1670 = vadd.xlane.f32.xlu0 %v1655
  %v1671 = vpop.xlane.xlu0 %1670
  %1672 = vadd.xlane.f32.xlu0 %v1657
  %v1673 = vpop.xlane.xlu0 %1672
  %1674 = vadd.xlane.f32.xlu0 %v1659
  %v1675 = vpop.xlane.xlu0 %1674
  %1676 = vadd.xlane.f32.xlu0 %v1661
  %v1677 = vpop.xlane.xlu0 %1676
  %1678 = vadd.xlane.f32.xlu0 %v1663
  %v1679 = vpop.xlane.xlu0 %1678
  %1680 = vadd.xlane.f32.xlu0 %v1665
  %v1681 = vpop.xlane.xlu0 %1680
  %1682 = vadd.xlane.f32.xlu0 %v1667
  %v1683 = vpop.xlane.xlu0 %1682
  %v1684 = vrcp.pop %v1669
  %v1685 = vmul.f32 %v1669, %v1684
  %v1686 = vsub.f32 1.0, %v1685
  %v1687 = vmul.f32 %v1684, %v1686
  %v1688 = vadd.f32 %v1684, %v1687
  %vm1689 = vweird.f32 %v1669
  %vm1690 = vweird.f32 %v1684
  %vm1691 = vmor %vm1689, %vm1690
  %v1692 = vsel %vm1691, %v1684, %v1688
  %v1693 = vand.u32 2147483647, %v1669
  %vm1694 = vcmp.eq.f32.partialorder %v1693, 8.507059e+37
  %v1695 = vand.u32 %v1669, 2147483648
  %v1696 = vor.u32 1.1754944e-38, %v1695
  %v1697 = vsel %vm1694, %v1696, %v1692
  %v1698 = vmul.f32 %v1653, %v1697
  %v1699 = vrcp.pop %v1671
  %v1700 = vmul.f32 %v1671, %v1699
  %v1701 = vsub.f32 1.0, %v1700
  %v1702 = vmul.f32 %v1699, %v1701
  %v1703 = vadd.f32 %v1699, %v1702
  %vm1704 = vweird.f32 %v1671
  %vm1705 = vweird.f32 %v1699
  %vm1706 = vmor %vm1704, %vm1705
  %v1707 = vsel %vm1706, %v1699, %v1703
  %v1708 = vand.u32 2147483647, %v1671
  %vm1709 = vcmp.eq.f32.partialorder %v1708, 8.507059e+37
  %v1710 = vand.u32 %v1671, 2147483648
  %v1711 = vor.u32 1.1754944e-38, %v1710
  %v1712 = vsel %vm1709, %v1711, %v1707
  %v1713 = vmul.f32 %v1655, %v1712
  %v1714 = vrcp.pop %v1673
  %v1715 = vmul.f32 %v1673, %v1714
  %v1716 = vsub.f32 1.0, %v1715
  %v1717 = vmul.f32 %v1714, %v1716
  %v1718 = vadd.f32 %v1714, %v1717
  %vm1719 = vweird.f32 %v1673
  %vm1720 = vweird.f32 %v1714
  %vm1721 = vmor %vm1719, %vm1720
  %v1722 = vsel %vm1721, %v1714, %v1718
  %v1723 = vand.u32 2147483647, %v1673
  %vm1724 = vcmp.eq.f32.partialorder %v1723, 8.507059e+37
  %v1725 = vand.u32 %v1673, 2147483648
  %v1726 = vor.u32 1.1754944e-38, %v1725
  %v1727 = vsel %vm1724, %v1726, %v1722
  %v1728 = vmul.f32 %v1657, %v1727
  %v1729 = vrcp.pop %v1675
  %v1730 = vmul.f32 %v1675, %v1729
  %v1731 = vsub.f32 1.0, %v1730
  %v1732 = vmul.f32 %v1729, %v1731
  %v1733 = vadd.f32 %v1729, %v1732
  %vm1734 = vweird.f32 %v1675
  %vm1735 = vweird.f32 %v1729
  %vm1736 = vmor %vm1734, %vm1735
  %v1737 = vsel %vm1736, %v1729, %v1733
  %v1738 = vand.u32 2147483647, %v1675
  %vm1739 = vcmp.eq.f32.partialorder %v1738, 8.507059e+37
  %v1740 = vand.u32 %v1675, 2147483648
  %v1741 = vor.u32 1.1754944e-38, %v1740
  %v1742 = vsel %vm1739, %v1741, %v1737
  %v1743 = vmul.f32 %v1659, %v1742
  %v1744 = vrcp.pop %v1677
  %v1745 = vmul.f32 %v1677, %v1744
  %v1746 = vsub.f32 1.0, %v1745
  %v1747 = vmul.f32 %v1744, %v1746
  %v1748 = vadd.f32 %v1744, %v1747
  %vm1749 = vweird.f32 %v1677
  %vm1750 = vweird.f32 %v1744
  %vm1751 = vmor %vm1749, %vm1750
  %v1752 = vsel %vm1751, %v1744, %v1748
  %v1753 = vand.u32 2147483647, %v1677
  %vm1754 = vcmp.eq.f32.partialorder %v1753, 8.507059e+37
  %v1755 = vand.u32 %v1677, 2147483648
  %v1756 = vor.u32 1.1754944e-38, %v1755
  %v1757 = vsel %vm1754, %v1756, %v1752
  %v1758 = vmul.f32 %v1661, %v1757
  %v1759 = vrcp.pop %v1679
  %v1760 = vmul.f32 %v1679, %v1759
  %v1761 = vsub.f32 1.0, %v1760
  %v1762 = vmul.f32 %v1759, %v1761
  %v1763 = vadd.f32 %v1759, %v1762
  %vm1764 = vweird.f32 %v1679
  %vm1765 = vweird.f32 %v1759
  %vm1766 = vmor %vm1764, %vm1765
  %v1767 = vsel %vm1766, %v1759, %v1763
  %v1768 = vand.u32 2147483647, %v1679
  %vm1769 = vcmp.eq.f32.partialorder %v1768, 8.507059e+37
  %v1770 = vand.u32 %v1679, 2147483648
  %v1771 = vor.u32 1.1754944e-38, %v1770
  %v1772 = vsel %vm1769, %v1771, %v1767
  %v1773 = vmul.f32 %v1663, %v1772
  %v1774 = vrcp.pop %v1681
  %v1775 = vmul.f32 %v1681, %v1774
  %v1776 = vsub.f32 1.0, %v1775
  %v1777 = vmul.f32 %v1774, %v1776
  %v1778 = vadd.f32 %v1774, %v1777
  %vm1779 = vweird.f32 %v1681
  %vm1780 = vweird.f32 %v1774
  %vm1781 = vmor %vm1779, %vm1780
  %v1782 = vsel %vm1781, %v1774, %v1778
  %v1783 = vand.u32 2147483647, %v1681
  %vm1784 = vcmp.eq.f32.partialorder %v1783, 8.507059e+37
  %v1785 = vand.u32 %v1681, 2147483648
  %v1786 = vor.u32 1.1754944e-38, %v1785
  %v1787 = vsel %vm1784, %v1786, %v1782
  %v1788 = vmul.f32 %v1665, %v1787
  %v1789 = vrcp.pop %v1683
  %v1790 = vmul.f32 %v1683, %v1789
  %v1791 = vsub.f32 1.0, %v1790
  %v1792 = vmul.f32 %v1789, %v1791
  %v1793 = vadd.f32 %v1789, %v1792
  %vm1794 = vweird.f32 %v1683
  %vm1795 = vweird.f32 %v1789
  %vm1796 = vmor %vm1794, %vm1795
  %v1797 = vsel %vm1796, %v1789, %v1793
  %v1798 = vand.u32 2147483647, %v1683
  %vm1799 = vcmp.eq.f32.partialorder %v1798, 8.507059e+37
  %v1800 = vand.u32 %v1683, 2147483648
  %v1801 = vor.u32 1.1754944e-38, %v1800
  %v1802 = vsel %vm1799, %v1801, %v1797
  %v1803 = vmul.f32 %v1667, %v1802
  %1804 = vmatpush.msra.mxu0 %v1351
  %1805 = vmatpush.msra.mxu0 %v1350
  %1806 = vmatpush.msra.mxu0 %v1349
  %1807 = vmatpush.msra.mxu0 %v1348
  %1808 = vmatpush.msra.mxu0 %v1347
  %1809 = vmatpush.msra.mxu0 %v1346
  %1810 = vmatpush.msra.mxu0 %v1345
  %1811 = vmatpush.msra.mxu0 %v1344
  %1812 = vmatpush.msra.mxu0 %v1343
  %1813 = vmatpush.msra.mxu0 %v1342
  %1814 = vmatpush.msra.mxu0 %v1341
  %1815 = vmatpush.msra.mxu0 %v1340
  %1816 = vmatpush.msra.mxu0 %v1339
  %1817 = vmatpush.msra.mxu0 %v1338
  %1818 = vmatpush.msra.mxu0 %v1337
  %1819 = vmatpush.msra.mxu0 %v1336
  %1820 = vmatmul.f32.gmra.mxu0 %v1698
  %v1821 = vpop.f32.mrf.mxu0
  %v1822 = vadd.f32 0.0, %v1821
  %1823 = vdwg.mxu0
  %1824 = vmatpush.msra.mxu0 %v1367
  %1825 = vmatpush.msra.mxu0 %v1366
  %1826 = vmatpush.msra.mxu0 %v1365
  %1827 = vmatpush.msra.mxu0 %v1364
  %1828 = vmatpush.msra.mxu0 %v1363
  %1829 = vmatpush.msra.mxu0 %v1362
  %1830 = vmatpush.msra.mxu0 %v1361
  %1831 = vmatpush.msra.mxu0 %v1360
  %1832 = vmatpush.msra.mxu0 %v1359
  %1833 = vmatpush.msra.mxu0 %v1358
  %1834 = vmatpush.msra.mxu0 %v1357
  %1835 = vmatpush.msra.mxu0 %v1356
  %1836 = vmatpush.msra.mxu0 %v1355
  %1837 = vmatpush.msra.mxu0 %v1354
  %1838 = vmatpush.msra.mxu0 %v1353
  %1839 = vmatpush.msra.mxu0 %v1352
  %1840 = vmatmul.f32.gmra.mxu0 %v1713
  %v1841 = vpop.f32.mrf.mxu0
  %v1842 = vadd.f32 0.0, %v1841
  %1843 = vdwg.mxu0
  %1844 = vmatpush.msra.mxu0 %v1383
  %1845 = vmatpush.msra.mxu0 %v1382
  %1846 = vmatpush.msra.mxu0 %v1381
  %1847 = vmatpush.msra.mxu0 %v1380
  %1848 = vmatpush.msra.mxu0 %v1379
  %1849 = vmatpush.msra.mxu0 %v1378
  %1850 = vmatpush.msra.mxu0 %v1377
  %1851 = vmatpush.msra.mxu0 %v1376
  %1852 = vmatpush.msra.mxu0 %v1375
  %1853 = vmatpush.msra.mxu0 %v1374
  %1854 = vmatpush.msra.mxu0 %v1373
  %1855 = vmatpush.msra.mxu0 %v1372
  %1856 = vmatpush.msra.mxu0 %v1371
  %1857 = vmatpush.msra.mxu0 %v1370
  %1858 = vmatpush.msra.mxu0 %v1369
  %1859 = vmatpush.msra.mxu0 %v1368
  %1860 = vmatmul.f32.gmra.mxu0 %v1728
  %v1861 = vpop.f32.mrf.mxu0
  %v1862 = vadd.f32 0.0, %v1861
  %1863 = vdwg.mxu0
  %1864 = vmatpush.msra.mxu0 %v1399
  %1865 = vmatpush.msra.mxu0 %v1398
  %1866 = vmatpush.msra.mxu0 %v1397
  %1867 = vmatpush.msra.mxu0 %v1396
  %1868 = vmatpush.msra.mxu0 %v1395
  %1869 = vmatpush.msra.mxu0 %v1394
  %1870 = vmatpush.msra.mxu0 %v1393
  %1871 = vmatpush.msra.mxu0 %v1392
  %1872 = vmatpush.msra.mxu0 %v1391
  %1873 = vmatpush.msra.mxu0 %v1390
  %1874 = vmatpush.msra.mxu0 %v1389
  %1875 = vmatpush.msra.mxu0 %v1388
  %1876 = vmatpush.msra.mxu0 %v1387
  %1877 = vmatpush.msra.mxu0 %v1386
  %1878 = vmatpush.msra.mxu0 %v1385
  %1879 = vmatpush.msra.mxu0 %v1384
  %1880 = vmatmul.f32.gmra.mxu0 %v1743
  %v1881 = vpop.f32.mrf.mxu0
  %v1882 = vadd.f32 0.0, %v1881
  %1883 = vdwg.mxu0
  %1884 = vmatpush.msra.mxu0 %v1415
  %1885 = vmatpush.msra.mxu0 %v1414
  %1886 = vmatpush.msra.mxu0 %v1413
  %1887 = vmatpush.msra.mxu0 %v1412
  %1888 = vmatpush.msra.mxu0 %v1411
  %1889 = vmatpush.msra.mxu0 %v1410
  %1890 = vmatpush.msra.mxu0 %v1409
  %1891 = vmatpush.msra.mxu0 %v1408
  %1892 = vmatpush.msra.mxu0 %v1407
  %1893 = vmatpush.msra.mxu0 %v1406
  %1894 = vmatpush.msra.mxu0 %v1405
  %1895 = vmatpush.msra.mxu0 %v1404
  %1896 = vmatpush.msra.mxu0 %v1403
  %1897 = vmatpush.msra.mxu0 %v1402
  %1898 = vmatpush.msra.mxu0 %v1401
  %1899 = vmatpush.msra.mxu0 %v1400
  %1900 = vmatmul.f32.gmra.mxu0 %v1758
  %v1901 = vpop.f32.mrf.mxu0
  %v1902 = vadd.f32 0.0, %v1901
  %1903 = vdwg.mxu0
  %1904 = vmatpush.msra.mxu0 %v1431
  %1905 = vmatpush.msra.mxu0 %v1430
  %1906 = vmatpush.msra.mxu0 %v1429
  %1907 = vmatpush.msra.mxu0 %v1428
  %1908 = vmatpush.msra.mxu0 %v1427
  %1909 = vmatpush.msra.mxu0 %v1426
  %1910 = vmatpush.msra.mxu0 %v1425
  %1911 = vmatpush.msra.mxu0 %v1424
  %1912 = vmatpush.msra.mxu0 %v1423
  %1913 = vmatpush.msra.mxu0 %v1422
  %1914 = vmatpush.msra.mxu0 %v1421
  %1915 = vmatpush.msra.mxu0 %v1420
  %1916 = vmatpush.msra.mxu0 %v1419
  %1917 = vmatpush.msra.mxu0 %v1418
  %1918 = vmatpush.msra.mxu0 %v1417
  %1919 = vmatpush.msra.mxu0 %v1416
  %1920 = vmatmul.f32.gmra.mxu0 %v1773
  %v1921 = vpop.f32.mrf.mxu0
  %v1922 = vadd.f32 0.0, %v1921
  %1923 = vdwg.mxu0
  %1924 = vmatpush.msra.mxu0 %v1447
  %1925 = vmatpush.msra.mxu0 %v1446
  %1926 = vmatpush.msra.mxu0 %v1445
  %1927 = vmatpush.msra.mxu0 %v1444
  %1928 = vmatpush.msra.mxu0 %v1443
  %1929 = vmatpush.msra.mxu0 %v1442
  %1930 = vmatpush.msra.mxu0 %v1441
  %1931 = vmatpush.msra.mxu0 %v1440
  %1932 = vmatpush.msra.mxu0 %v1439
  %1933 = vmatpush.msra.mxu0 %v1438
  %1934 = vmatpush.msra.mxu0 %v1437
  %1935 = vmatpush.msra.mxu0 %v1436
  %1936 = vmatpush.msra.mxu0 %v1435
  %1937 = vmatpush.msra.mxu0 %v1434
  %1938 = vmatpush.msra.mxu0 %v1433
  %1939 = vmatpush.msra.mxu0 %v1432
  %1940 = vmatmul.f32.gmra.mxu0 %v1788
  %v1941 = vpop.f32.mrf.mxu0
  %v1942 = vadd.f32 0.0, %v1941
  %1943 = vdwg.mxu0
  %1944 = vmatpush.msra.mxu0 %v1463
  %1945 = vmatpush.msra.mxu0 %v1462
  %1946 = vmatpush.msra.mxu0 %v1461
  %1947 = vmatpush.msra.mxu0 %v1460
  %1948 = vmatpush.msra.mxu0 %v1459
  %1949 = vmatpush.msra.mxu0 %v1458
  %1950 = vmatpush.msra.mxu0 %v1457
  %1951 = vmatpush.msra.mxu0 %v1456
  %1952 = vmatpush.msra.mxu0 %v1455
  %1953 = vmatpush.msra.mxu0 %v1454
  %1954 = vmatpush.msra.mxu0 %v1453
  %1955 = vmatpush.msra.mxu0 %v1452
  %1956 = vmatpush.msra.mxu0 %v1451
  %1957 = vmatpush.msra.mxu0 %v1450
  %1958 = vmatpush.msra.mxu0 %v1449
  %1959 = vmatpush.msra.mxu0 %v1448
  %1960 = vmatmul.f32.gmra.mxu0 %v1803
  %v1961 = vpop.f32.mrf.mxu0
  %v1962 = vadd.f32 0.0, %v1961
  %1963 = vdwg.mxu0
  %v1964 = vld [vmem:[%s8] sm:$0xff]
  %v1965 = vld [vmem:[%s8 + $0x8] sm:$0xff]
  %v1966 = vld [vmem:[%s8 + $0x10] sm:$0xff]
  %v1967 = vld [vmem:[%s8 + $0x18] sm:$0xff]
  %v1968 = vld [vmem:[%s8 + $0x20] sm:$0xff]
  %v1969 = vld [vmem:[%s8 + $0x28] sm:$0xff]
  %v1970 = vld [vmem:[%s8 + $0x30] sm:$0xff]
  %v1971 = vld [vmem:[%s8 + $0x38] sm:$0xff]
  %v1972 = vld [vmem:[%s8 + $0x40] sm:$0xff]
  %v1973 = vld [vmem:[%s8 + $0x48] sm:$0xff]
  %v1974 = vld [vmem:[%s8 + $0x50] sm:$0xff]
  %v1975 = vld [vmem:[%s8 + $0x58] sm:$0xff]
  %v1976 = vld [vmem:[%s8 + $0x60] sm:$0xff]
  %v1977 = vld [vmem:[%s8 + $0x68] sm:$0xff]
  %v1978 = vld [vmem:[%s8 + $0x70] sm:$0xff]
  %v1979 = vld [vmem:[%s8 + $0x78] sm:$0xff]
  %v1980 = vld [vmem:[%s9] sm:$0xff]
  %v1981 = vld [vmem:[%s9 + $0x8] sm:$0xff]
  %v1982 = vld [vmem:[%s9 + $0x10] sm:$0xff]
  %v1983 = vld [vmem:[%s9 + $0x18] sm:$0xff]
  %v1984 = vld [vmem:[%s9 + $0x20] sm:$0xff]
  %v1985 = vld [vmem:[%s9 + $0x28] sm:$0xff]
  %v1986 = vld [vmem:[%s9 + $0x30] sm:$0xff]
  %v1987 = vld [vmem:[%s9 + $0x38] sm:$0xff]
  %v1988 = vld [vmem:[%s9 + $0x40] sm:$0xff]
  %v1989 = vld [vmem:[%s9 + $0x48] sm:$0xff]
  %v1990 = vld [vmem:[%s9 + $0x50] sm:$0xff]
  %v1991 = vld [vmem:[%s9 + $0x58] sm:$0xff]
  %v1992 = vld [vmem:[%s9 + $0x60] sm:$0xff]
  %v1993 = vld [vmem:[%s9 + $0x68] sm:$0xff]
  %v1994 = vld [vmem:[%s9 + $0x70] sm:$0xff]
  %v1995 = vld [vmem:[%s9 + $0x78] sm:$0xff]
  %1996 = vmatpush.msra.mxu0 %v1995
  %1997 = vmatpush.msra.mxu0 %v1994
  %1998 = vmatpush.msra.mxu0 %v1993
  %1999 = vmatpush.msra.mxu0 %v1992
  %2000 = vmatpush.msra.mxu0 %v1991
  %2001 = vmatpush.msra.mxu0 %v1990
  %2002 = vmatpush.msra.mxu0 %v1989
  %2003 = vmatpush.msra.mxu0 %v1988
  %2004 = vmatpush.msra.mxu0 %v1987
  %2005 = vmatpush.msra.mxu0 %v1986
  %2006 = vmatpush.msra.mxu0 %v1985
  %2007 = vmatpush.msra.mxu0 %v1984
  %2008 = vmatpush.msra.mxu0 %v1983
  %2009 = vmatpush.msra.mxu0 %v1982
  %2010 = vmatpush.msra.mxu0 %v1981
  %2011 = vmatpush.msra.mxu0 %v1980
  %2012 = vmatmul.f32.gmra.mxu0 %v1328
  %v2013 = vpop.f32.mrf.mxu0
  %v2014 = vadd.f32 0.0, %v2013
  %2015 = vmatmul.f32.gmra.mxu0 %v1329
  %v2016 = vpop.f32.mrf.mxu0
  %v2017 = vadd.f32 0.0, %v2016
  %2018 = vmatmul.f32.gmra.mxu0 %v1330
  %v2019 = vpop.f32.mrf.mxu0
  %v2020 = vadd.f32 0.0, %v2019
  %2021 = vmatmul.f32.gmra.mxu0 %v1331
  %v2022 = vpop.f32.mrf.mxu0
  %v2023 = vadd.f32 0.0, %v2022
  %2024 = vmatmul.f32.gmra.mxu0 %v1332
  %v2025 = vpop.f32.mrf.mxu0
  %v2026 = vadd.f32 0.0, %v2025
  %2027 = vmatmul.f32.gmra.mxu0 %v1333
  %v2028 = vpop.f32.mrf.mxu0
  %v2029 = vadd.f32 0.0, %v2028
  %2030 = vmatmul.f32.gmra.mxu0 %v1334
  %v2031 = vpop.f32.mrf.mxu0
  %v2032 = vadd.f32 0.0, %v2031
  %2033 = vmatmul.f32.gmra.mxu0 %v1335
  %v2034 = vpop.f32.mrf.mxu0
  %v2035 = vadd.f32 0.0, %v2034
  %2036 = vdwg.mxu0
  %2037 = vmatpush.msra.mxu0 %v1979
  %2038 = vmatpush.msra.mxu0 %v1978
  %2039 = vmatpush.msra.mxu0 %v1977
  %2040 = vmatpush.msra.mxu0 %v1976
  %2041 = vmatpush.msra.mxu0 %v1975
  %2042 = vmatpush.msra.mxu0 %v1974
  %2043 = vmatpush.msra.mxu0 %v1973
  %2044 = vmatpush.msra.mxu0 %v1972
  %2045 = vmatpush.msra.mxu0 %v1971
  %2046 = vmatpush.msra.mxu0 %v1970
  %2047 = vmatpush.msra.mxu0 %v1969
  %2048 = vmatpush.msra.mxu0 %v1968
  %2049 = vmatpush.msra.mxu0 %v1967
  %2050 = vmatpush.msra.mxu0 %v1966
  %2051 = vmatpush.msra.mxu0 %v1965
  %2052 = vmatpush.msra.mxu0 %v1964
  %2053 = vmatmul.f32.gmra.mxu0 %v1822
  %v2054 = vpop.f32.mrf.mxu0
  %v2055 = vadd.f32 %v2014, %v2054
  %2056 = vmatmul.f32.gmra.mxu0 %v1842
  %v2057 = vpop.f32.mrf.mxu0
  %v2058 = vadd.f32 %v2017, %v2057
  %2059 = vmatmul.f32.gmra.mxu0 %v1862
  %v2060 = vpop.f32.mrf.mxu0
  %v2061 = vadd.f32 %v2020, %v2060
  %2062 = vmatmul.f32.gmra.mxu0 %v1882
  %v2063 = vpop.f32.mrf.mxu0
  %v2064 = vadd.f32 %v2023, %v2063
  %2065 = vmatmul.f32.gmra.mxu0 %v1902
  %v2066 = vpop.f32.mrf.mxu0
  %v2067 = vadd.f32 %v2026, %v2066
  %2068 = vmatmul.f32.gmra.mxu0 %v1922
  %v2069 = vpop.f32.mrf.mxu0
  %v2070 = vadd.f32 %v2029, %v2069
  %2071 = vmatmul.f32.gmra.mxu0 %v1942
  %v2072 = vpop.f32.mrf.mxu0
  %v2073 = vadd.f32 %v2032, %v2072
  %2074 = vmatmul.f32.gmra.mxu0 %v1962
  %v2075 = vpop.f32.mrf.mxu0
  %v2076 = vadd.f32 %v2035, %v2075
  %2077 = vdwg.mxu0
  %v2078 = vld [vmem:[%s10] sm:$0x1]
  %v2080 = vperm.slane %v2078, 0
  %v2082 = vadd.f32 %v2055, %v2080
  %v2083 = vadd.f32 %v2058, %v2080
  %v2084 = vadd.f32 %v2061, %v2080
  %v2085 = vadd.f32 %v2064, %v2080
  %v2086 = vadd.f32 %v2067, %v2080
  %v2087 = vadd.f32 %v2070, %v2080
  %v2088 = vadd.f32 %v2073, %v2080
  %v2089 = vadd.f32 %v2076, %v2080
  %v2090 = vtanh.pop %v2082
  %v2091 = vtanh.pop %v2083
  %v2092 = vtanh.pop %v2084
  %v2093 = vtanh.pop %v2085
  %v2094 = vtanh.pop %v2086
  %v2095 = vtanh.pop %v2087
  %v2096 = vtanh.pop %v2088
  %v2097 = vtanh.pop %v2089
  %v2098 = vld [vmem:[%s11] sm:$0xff]
  %v2099 = vld [vmem:[%s11 + $0x8] sm:$0xff]
  %v2100 = vld [vmem:[%s11 + $0x10] sm:$0xff]
  %v2101 = vld [vmem:[%s11 + $0x18] sm:$0xff]
  %v2102 = vld [vmem:[%s11 + $0x20] sm:$0xff]
  %v2103 = vld [vmem:[%s11 + $0x28] sm:$0xff]
  %v2104 = vld [vmem:[%s11 + $0x30] sm:$0xff]
  %v2105 = vld [vmem:[%s11 + $0x38] sm:$0xff]
  %v2106 = vld [vmem:[%s11 + $0x40] sm:$0xff]
  %v2107 = vld [vmem:[%s11 + $0x48] sm:$0xff]
  %v2108 = vld [vmem:[%s11 + $0x50] sm:$0xff]
  %v2109 = vld [vmem:[%s11 + $0x58] sm:$0xff]
  %v2110 = vld [vmem:[%s11 + $0x60] sm:$0xff]
  %v2111 = vld [vmem:[%s11 + $0x68] sm:$0xff]
  %v2112 = vld [vmem:[%s11 + $0x70] sm:$0xff]
  %v2113 = vld [vmem:[%s11 + $0x78] sm:$0xff]
  %v2114 = vld [vmem:[%s12] sm:$0x1]
  %v2116 = vperm.slane %v2114, 0
  %2118 = vmatpush.msra.mxu0 %v2113
  %2119 = vmatpush.msra.mxu0 %v2112
  %2120 = vmatpush.msra.mxu0 %v2111
  %2121 = vmatpush.msra.mxu0 %v2110
  %2122 = vmatpush.msra.mxu0 %v2109
  %2123 = vmatpush.msra.mxu0 %v2108
  %2124 = vmatpush.msra.mxu0 %v2107
  %2125 = vmatpush.msra.mxu0 %v2106
  %2126 = vmatpush.msra.mxu0 %v2105
  %2127 = vmatpush.msra.mxu0 %v2104
  %2128 = vmatpush.msra.mxu0 %v2103
  %2129 = vmatpush.msra.mxu0 %v2102
  %2130 = vmatpush.msra.mxu0 %v2101
  %2131 = vmatpush.msra.mxu0 %v2100
  %2132 = vmatpush.msra.mxu0 %v2099
  %2133 = vmatpush.msra.mxu0 %v2098
  %2134 = vmatmul.f32.gmra.mxu0 %v2090
  %v2135 = vpop.f32.mrf.mxu0
  %v2136 = vadd.f32 %v2116, %v2135
  %2137 = vmatmul.f32.gmra.mxu0 %v2091
  %v2138 = vpop.f32.mrf.mxu0
  %v2139 = vadd.f32 %v2116, %v2138
  %2140 = vmatmul.f32.gmra.mxu0 %v2092
  %v2141 = vpop.f32.mrf.mxu0
  %v2142 = vadd.f32 %v2116, %v2141
  %2143 = vmatmul.f32.gmra.mxu0 %v2093
  %v2144 = vpop.f32.mrf.mxu0
  %v2145 = vadd.f32 %v2116, %v2144
  %2146 = vmatmul.f32.gmra.mxu0 %v2094
  %v2147 = vpop.f32.mrf.mxu0
  %v2148 = vadd.f32 %v2116, %v2147
  %2149 = vmatmul.f32.gmra.mxu0 %v2095
  %v2150 = vpop.f32.mrf.mxu0
  %v2151 = vadd.f32 %v2116, %v2150
  %2152 = vmatmul.f32.gmra.mxu0 %v2096
  %v2153 = vpop.f32.mrf.mxu0
  %v2154 = vadd.f32 %v2116, %v2153
  %2155 = vmatmul.f32.gmra.mxu0 %v2097
  %v2156 = vpop.f32.mrf.mxu0
  %v2157 = vadd.f32 %v2116, %v2156
  %2158 = vdwg.mxu0
  %2159 = vmax.xlane.f32.xlu0 %v2136
  %v2160 = vpop.xlane.xlu0 %2159
  %2161 = vmax.xlane.f32.xlu0 %v2139
  %v2162 = vpop.xlane.xlu0 %2161
  %2163 = vmax.xlane.f32.xlu0 %v2142
  %v2164 = vpop.xlane.xlu0 %2163
  %2165 = vmax.xlane.f32.xlu0 %v2145
  %v2166 = vpop.xlane.xlu0 %2165
  %2167 = vmax.xlane.f32.xlu0 %v2148
  %v2168 = vpop.xlane.xlu0 %2167
  %2169 = vmax.xlane.f32.xlu0 %v2151
  %v2170 = vpop.xlane.xlu0 %2169
  %2171 = vmax.xlane.f32.xlu0 %v2154
  %v2172 = vpop.xlane.xlu0 %2171
  %2173 = vmax.xlane.f32.xlu0 %v2157
  %v2174 = vpop.xlane.xlu0 %2173
  %v2175 = vsub.f32 %v2136, %v2160
  %v2176 = vsub.f32 %v2139, %v2162
  %v2177 = vsub.f32 %v2142, %v2164
  %v2178 = vsub.f32 %v2145, %v2166
  %v2179 = vsub.f32 %v2148, %v2168
  %v2180 = vsub.f32 %v2151, %v2170
  %v2181 = vsub.f32 %v2154, %v2172
  %v2182 = vsub.f32 %v2157, %v2174
  %v2183 = vmul.f32 %v2175, 1.442695
  %v2184 = vpow.pop %v2183
  %v2185 = vmul.f32 %v2176, 1.442695
  %v2186 = vpow.pop %v2185
  %v2187 = vmul.f32 %v2177, 1.442695
  %v2188 = vpow.pop %v2187
  %v2189 = vmul.f32 %v2178, 1.442695
  %v2190 = vpow.pop %v2189
  %v2191 = vmul.f32 %v2179, 1.442695
  %v2192 = vpow.pop %v2191
  %v2193 = vmul.f32 %v2180, 1.442695
  %v2194 = vpow.pop %v2193
  %v2195 = vmul.f32 %v2181, 1.442695
  %v2196 = vpow.pop %v2195
  %v2197 = vmul.f32 %v2182, 1.442695
  %v2198 = vpow.pop %v2197
  %2199 = vadd.xlane.f32.xlu0 %v2184
  %v2200 = vpop.xlane.xlu0 %2199
  %2201 = vadd.xlane.f32.xlu0 %v2186
  %v2202 = vpop.xlane.xlu0 %2201
  %2203 = vadd.xlane.f32.xlu0 %v2188
  %v2204 = vpop.xlane.xlu0 %2203
  %2205 = vadd.xlane.f32.xlu0 %v2190
  %v2206 = vpop.xlane.xlu0 %2205
  %2207 = vadd.xlane.f32.xlu0 %v2192
  %v2208 = vpop.xlane.xlu0 %2207
  %2209 = vadd.xlane.f32.xlu0 %v2194
  %v2210 = vpop.xlane.xlu0 %2209
  %2211 = vadd.xlane.f32.xlu0 %v2196
  %v2212 = vpop.xlane.xlu0 %2211
  %2213 = vadd.xlane.f32.xlu0 %v2198
  %v2214 = vpop.xlane.xlu0 %2213
  %v2215 = vlog2.pop %v2200
  %v2216 = vmul.f32 %v2215, 0.6931472
  %v2217 = vlog2.pop %v2202
  %v2218 = vmul.f32 %v2217, 0.6931472
  %v2219 = vlog2.pop %v2204
  %v2220 = vmul.f32 %v2219, 0.6931472
  %v2221 = vlog2.pop %v2206
  %v2222 = vmul.f32 %v2221, 0.6931472
  %v2223 = vlog2.pop %v2208
  %v2224 = vmul.f32 %v2223, 0.6931472
  %v2225 = vlog2.pop %v2210
  %v2226 = vmul.f32 %v2225, 0.6931472
  %v2227 = vlog2.pop %v2212
  %v2228 = vmul.f32 %v2227, 0.6931472
  %v2229 = vlog2.pop %v2214
  %v2230 = vmul.f32 %v2229, 0.6931472
  %v2231 = vadd.f32 %v2160, %v2216
  %v2232 = vadd.f32 %v2162, %v2218
  %v2233 = vadd.f32 %v2164, %v2220
  %v2234 = vadd.f32 %v2166, %v2222
  %v2235 = vadd.f32 %v2168, %v2224
  %v2236 = vadd.f32 %v2170, %v2226
  %v2237 = vadd.f32 %v2172, %v2228
  %v2238 = vadd.f32 %v2174, %v2230
  %v2239 = vsub.f32 %v2136, %v2231
  %v2240 = vsub.f32 %v2139, %v2232
  %v2241 = vsub.f32 %v2142, %v2233
  %v2242 = vsub.f32 %v2145, %v2234
  %v2243 = vsub.f32 %v2148, %v2235
  %v2244 = vsub.f32 %v2151, %v2236
  %v2245 = vsub.f32 %v2154, %v2237
  %v2246 = vsub.f32 %v2157, %v2238
  %2247 = vst [vmem:[%s13] sm:$0xff] %v2239
  %2248 = vst [vmem:[%s13 + $0x8] sm:$0xff] %v2240
  %2249 = vst [vmem:[%s13 + $0x10] sm:$0xff] %v2241
  %2250 = vst [vmem:[%s13 + $0x18] sm:$0xff] %v2242
  %2251 = vst [vmem:[%s13 + $0x20] sm:$0xff] %v2243
  %2252 = vst [vmem:[%s13 + $0x28] sm:$0xff] %v2244
  %2253 = vst [vmem:[%s13 + $0x30] sm:$0xff] %v2245
  %2254 = vst [vmem:[%s13 + $0x38] sm:$0xff] %v2246
  // Predicated region
  $region54: #{speller_forward.1} parent=0 // pred_check
    _
  $region55: #{speller_forward.1} parent=0 // pred_check_branch
    %2256 = sbr.rel (0) target = $region57
  $region56: #{speller_forward.1} parent=0 // pred_region
    _
  $region57: #{speller_forward.1} parent=0 // pred_fallthru
    _
  // Predicated region
  $region58: #{speller_forward.1} parent=0 // pred_check
    _
  $region59: #{speller_forward.1} parent=0 // pred_check_branch
    %2258 = sbr.rel (0) target = $region61
  $region60: #{speller_forward.1} parent=0 // pred_region
    _
  $region61: #{speller_forward.1} parent=0 // pred_fallthru
    _

</llo_original>
